<compile_context>
chip_gen: v5e
topology: v5e:2x2
jax: 0.10.0
libtpu: 0.0.40
codegen_flags: <defaults>
</compile_context>

<pallas_src>
import functools

import jax
import jax.numpy as jnp
from jax.experimental import pallas as pl
from jax.experimental.pallas import tpu as pltpu


def _round_up(x, m):
    return ((x + m - 1) // m) * m


def _pad_rows(x, rows):
    if x.shape[0] == rows:
        return x
    pad = jnp.zeros((rows - x.shape[0],) + x.shape[1:], x.dtype)
    return jnp.concatenate([x, pad], axis=0)


def _p2p_kernel(pressure_ref, chair_ref, prev_ref,
                pw1_ref, pb1_ref, pw2_ref, pb2_ref,
                cw1_ref, cb1_ref, cw2_ref, cb2_ref,
                fw1p_ref, fw1c_ref, fw1t_ref, fb1_ref,
                fw2_ref, fb2_ref,
                out_ref, *, n_points):
    f32, bf16 = jnp.float32, jnp.bfloat16

    # --- pressure encoder: Flatten -> Linear -> ReLU -> Linear -------------------
    p = pressure_ref[...].astype(bf16)                                   # (TB, P)
    h = jnp.dot(p, pw1_ref[...], preferred_element_type=f32) + pb1_ref[...]
    h = jnp.maximum(h, 0.0)
    pressure_feat = (jnp.dot(h.astype(bf16), pw2_ref[...],
                             preferred_element_type=f32) + pb2_ref[...])  # (TB, T)

    # --- chair encoder: Linear(3,64) -> ReLU -> Linear(64,C) -> ReLU -------------
    # Layer 1 runs on the MXU: chair points arrive zero-padded to K=8 and cw1 is
    # zero-padded to (8, 128); the zero rows/cols contribute nothing.
    c = chair_ref[...].astype(bf16)                                      # (TB*N, 8)
    ch = jnp.dot(c, cw1_ref[...], preferred_element_type=f32) + cb1_ref[...]
    ch = jnp.maximum(ch, 0.0)                                            # (TB*N, CHp)
    cf = jnp.dot(ch.astype(bf16), cw2_ref[...], preferred_element_type=f32) + cb2_ref[...]
    cf = jnp.maximum(cf, 0.0)                                            # (TB*N, C)

    # permute + AdaptiveAvgPool1d(1) + squeeze == mean over the N points per row.
    tb_n, feat_c = cf.shape
    tb = tb_n // n_points
    chair_feat = jnp.sum(cf.reshape(tb, n_points, feat_c), axis=1) * (1.0 / n_points)

    # --- fc head: concat expressed as three accumulating matmuls -----------------
    fh = (jnp.dot(pressure_feat.astype(bf16), fw1p_ref[...], preferred_element_type=f32)
          + jnp.dot(chair_feat.astype(bf16), fw1c_ref[...], preferred_element_type=f32)
          + jnp.dot(prev_ref[...].astype(bf16), fw1t_ref[...], preferred_element_type=f32)
          + fb1_ref[...])
    fh = jnp.maximum(fh, 0.0)
    out_ref[...] = (jnp.dot(fh.astype(bf16), fw2_ref[...],
                            preferred_element_type=f32)
                    + fb2_ref[...]).astype(out_ref.dtype)


def pressure2pose_forward(params, pressure, chair_points, prev_token=None, *,
                          block_b=256, vmem_limit_bytes=None):
    """Fused forward. pressure: (B,H,W); chair_points: (B,N,3); prev_token: (B,T)|None."""
    B = pressure.shape[0]
    N = chair_points.shape[1]
    P = pressure.shape[1] * pressure.shape[2]
    T = params["start_token"].shape[-1]
    C = params["cw2"].shape[-1]
    K = params["fw2"].shape[-1]
    f32, bf16 = jnp.float32, jnp.bfloat16

    # Batch tiling: tiles are multiples of 8 (f32 sublane). If the whole batch would
    # be one tile, split it so the "parallel" axis can shard across v7x's 2 TCs.
    tb_cap = _round_up(B, 8)
    tb = min(_round_up(block_b, 8), tb_cap)
    if tb == tb_cap and tb > 8:
        tb = max(8, _round_up((tb_cap + 1) // 2, 8))
    b_pad = _round_up(B, tb)
    n_tiles = b_pad // tb

    pressure_flat = _pad_rows(pressure.reshape(B, P).astype(f32), b_pad)

    # Chair points zero-padded from K=3 to K=8 (contiguous block per batch tile).
    chair2 = chair_points.reshape(B * N, 3).astype(f32)
    chair_flat = jnp.zeros((b_pad * N, 8), f32).at[:B * N, :3].set(chair2)

    if prev_token is None:
        prev_token = jnp.broadcast_to(params["start_token"], (B, T))
    prev = _pad_rows(prev_token.astype(f32), b_pad)

    # Chair hidden (64) zero-padded to lane-dense 128; layer-1 K padded 3 -> 8.
    ch_in = params["cw1"].shape[1]
    ch_pad = _round_up(ch_in, 128)
    cw1 = jnp.zeros((8, ch_pad), f32).at[:3, :ch_in].set(params["cw1"].astype(f32))
    cb1 = jnp.zeros((1, ch_pad), f32).at[:, :ch_in].set(params["cb1"].astype(f32))
    cw2 = jnp.zeros((ch_pad, C), f32).at[:ch_in, :].set(params["cw2"].astype(f32))

    # fc layer 1 split along the concat boundaries: [pressure_feat | chair_feat | prev].
    fw1 = params["fw1"]
    fw1p, fw1c, fw1t = fw1[:T], fw1[T:T + C], fw1[T + C:]

    # All matmul weights stored bf16 (fed directly to bf16 x bf16 MXU dots);
    # biases stay f32 (added after f32 accumulation).
    weights = (
        params["pw1"].astype(bf16), params["pb1"].astype(f32),
        params["pw2"].astype(bf16), params["pb2"].astype(f32),
        cw1.astype(bf16), cb1,
        cw2.astype(bf16), params["cb2"].astype(f32),
        fw1p.astype(bf16), fw1c.astype(bf16), fw1t.astype(bf16),
        params["fb1"].astype(f32),
        params["fw2"].astype(bf16), params["fb2"].astype(f32),
    )

    batch2 = lambda i: (i, 0)
    const2 = lambda i: (0, 0)
    in_specs = ([pl.BlockSpec((tb, P), batch2),
                 pl.BlockSpec((tb * N, 8), batch2),
                 pl.BlockSpec((tb, T), batch2)]
                + [pl.BlockSpec(w.shape, const2) for w in weights])

    cp_kwargs = dict(dimension_semantics=("parallel",))
    if vmem_limit_bytes is not None:
        cp_kwargs["vmem_limit_bytes"] = vmem_limit_bytes

    out = pl.pallas_call(
        functools.partial(_p2p_kernel, n_points=N),
        out_shape=jax.ShapeDtypeStruct((b_pad, K), f32),
        grid=(n_tiles,),
        in_specs=in_specs,
        out_specs=pl.BlockSpec((tb, K), batch2),
        compiler_params=pltpu.CompilerParams(**cp_kwargs),
    )(pressure_flat, chair_flat, prev, *weights)
    return out[:B]


def init_params(key, pressure_dim=(16, 8), chair_feat_dim=128,
                token_dim=128, codebook_size=256):
    """Deterministic synthetic parameters matching the nn.Module layer shapes (f32)."""
    pf = pressure_dim[0] * pressure_dim[1]
    combined_dim = token_dim + chair_feat_dim + token_dim
    ks = jax.random.split(key, 7)

    def lin(k, fan_in, fan_out):
        bound = 1.0 / jnp.sqrt(fan_in)
        return jax.random.uniform(k, (fan_in, fan_out), jnp.float32, -bound, bound)

    return {
        # pressure_encoder: Linear(pf, 512), Linear(512, token_dim)
        "pw1": lin(ks[0], pf, 512),            "pb1": jnp.zeros((1, 512), jnp.float32),
        "pw2": lin(ks[1], 512, token_dim),     "pb2": jnp.zeros((1, token_dim), jnp.float32),
        # chair_encoder: Linear(3, 64), Linear(64, chair_feat_dim)
        "cw1": lin(ks[2], 3, 64),              "cb1": jnp.zeros((1, 64), jnp.float32),
        "cw2": lin(ks[3], 64, chair_feat_dim), "cb2": jnp.zeros((1, chair_feat_dim), jnp.float32),
        # fc: Linear(combined, 512), Linear(512, codebook_size)
        "fw1": lin(ks[4], combined_dim, 512),  "fb1": jnp.zeros((1, 512), jnp.float32),
        "fw2": lin(ks[5], 512, codebook_size), "fb2": jnp.zeros((1, codebook_size), jnp.float32),
        "start_token": jax.random.normal(ks[6], (1, token_dim), jnp.float32),
    }


def _reference_forward(params, pressure, chair_points, prev_token=None):
    """Pure-JAX f32 reference mirroring the PyTorch module semantics."""
    B = pressure.shape[0]
    p = pressure.reshape(B, -1)
    h = jnp.maximum(p @ params["pw1"] + params["pb1"], 0.0)
    pressure_feat = h @ params["pw2"] + params["pb2"]
    ch = jnp.maximum(chair_points @ params["cw1"] + params["cb1"], 0.0)
    cf = jnp.maximum(ch @ params["cw2"] + params["cb2"], 0.0)     # (B, N, C)
    chair_feat = cf.mean(axis=1)                                  # AdaptiveAvgPool1d(1)
    if prev_token is None:
        prev_token = jnp.broadcast_to(params["start_token"],
                                      (B, params["start_token"].shape[-1]))
    combined = jnp.concatenate([pressure_feat, chair_feat, prev_token], axis=-1)
    fh = jnp.maximum(combined @ params["fw1"] + params["fb1"], 0.0)
    return fh @ params["fw2"] + params["fb2"]


if __name__ == "__main__":
    key = jax.random.PRNGKey(0)
    k_param, k_press, k_chair, k_press2, k_chair2 = jax.random.split(key, 5)

    N = 16
    pressure_dim = (16, 8)
    params = init_params(k_param, pressure_dim=pressure_dim,
                         chair_feat_dim=128, token_dim=128, codebook_size=256)

    # Case 1: tiny batch (single tile), prev_token=None path (learned start token).
    B = 2
    pressure = jax.random.normal(k_press, (B,) + pressure_dim, jnp.float32)
    chair_points = jax.random.normal(k_chair, (B, N, 3), jnp.float32)
    logits = pressure2pose_forward(params, pressure, chair_points, prev_token=None)
    logits = jax.block_until_ready(logits)
    assert logits.shape == (B, 256), logits.shape
    ref = _reference_forward(params, pressure, chair_points, prev_token=None)
    # bf16 matmuls with f32 accumulation vs. an all-f32 reference: loose-but-
    # structural tolerance (structural bugs produce O(1) discrepancies).
    assert jnp.allclose(logits, ref, atol=2e-2, rtol=2e-2), "mismatch vs reference (B=2)"

    # Case 2: batch that exercises multi-tile grid + padded batch rows.
    B2 = 10
    pressure2 = jax.random.normal(k_press2, (B2,) + pressure_dim, jnp.float32)
    chair_points2 = jax.random.normal(k_chair2, (B2, N, 3), jnp.float32)
    logits2 = pressure2pose_forward(params, pressure2, chair_points2, prev_token=None)
    logits2 = jax.block_until_ready(logits2)
    assert logits2.shape == (B2, 256), logits2.shape
    ref2 = _reference_forward(params, pressure2, chair_points2, prev_token=None)
    assert jnp.allclose(logits2, ref2, atol=2e-2, rtol=2e-2), "mismatch vs reference (B=10)"

    print("KERNEL_OK")
</pallas_src>

<mosaic_0001>
module attributes {stable_mosaic.version = 11 : i64} {
  func.func @_p2p_kernel(%arg0: i32, %arg1: memref<8x128xf32, #tpu.memory_space<vmem>>, %arg2: memref<128x8xf32, #tpu.memory_space<vmem>>, %arg3: memref<8x128xf32, #tpu.memory_space<vmem>>, %arg4: memref<128x512xbf16, #tpu.memory_space<vmem>>, %arg5: memref<1x512xf32, #tpu.memory_space<vmem>>, %arg6: memref<512x128xbf16, #tpu.memory_space<vmem>>, %arg7: memref<1x128xf32, #tpu.memory_space<vmem>>, %arg8: memref<8x128xbf16, #tpu.memory_space<vmem>>, %arg9: memref<1x128xf32, #tpu.memory_space<vmem>>, %arg10: memref<128x128xbf16, #tpu.memory_space<vmem>>, %arg11: memref<1x128xf32, #tpu.memory_space<vmem>>, %arg12: memref<128x512xbf16, #tpu.memory_space<vmem>>, %arg13: memref<128x512xbf16, #tpu.memory_space<vmem>>, %arg14: memref<128x512xbf16, #tpu.memory_space<vmem>>, %arg15: memref<1x512xf32, #tpu.memory_space<vmem>>, %arg16: memref<512x256xbf16, #tpu.memory_space<vmem>>, %arg17: memref<1x256xf32, #tpu.memory_space<vmem>>, %arg18: memref<8x256xf32, #tpu.memory_space<vmem>>) attributes {dimension_semantics = [#tpu.dimension_semantics<parallel>], iteration_bounds = array<i64: 1>, scalar_prefetch = 0 : i64, scratch_operands = 0 : i64, tpu.core_type = #tpu.core_type<tc>, window_params = [{transform_indices = @transform_0, window_bounds = array<i64: 8, 128>}, {transform_indices = @transform_1, window_bounds = array<i64: 128, 8>}, {transform_indices = @transform_2, window_bounds = array<i64: 8, 128>}, {pipeline_mode = #tpu.pipeline_mode<synchronous>, transform_indices = @transform_3, window_bounds = array<i64: 128, 512>}, {pipeline_mode = #tpu.pipeline_mode<synchronous>, transform_indices = @transform_4, window_bounds = array<i64: 1, 512>}, {pipeline_mode = #tpu.pipeline_mode<synchronous>, transform_indices = @transform_5, window_bounds = array<i64: 512, 128>}, {pipeline_mode = #tpu.pipeline_mode<synchronous>, transform_indices = @transform_6, window_bounds = array<i64: 1, 128>}, {pipeline_mode = #tpu.pipeline_mode<synchronous>, transform_indices = @transform_7, window_bounds = array<i64: 8, 128>}, {pipeline_mode = #tpu.pipeline_mode<synchronous>, transform_indices = @transform_8, window_bounds = array<i64: 1, 128>}, {pipeline_mode = #tpu.pipeline_mode<synchronous>, transform_indices = @transform_9, window_bounds = array<i64: 128, 128>}, {pipeline_mode = #tpu.pipeline_mode<synchronous>, transform_indices = @transform_10, window_bounds = array<i64: 1, 128>}, {pipeline_mode = #tpu.pipeline_mode<synchronous>, transform_indices = @transform_11, window_bounds = array<i64: 128, 512>}, {pipeline_mode = #tpu.pipeline_mode<synchronous>, transform_indices = @transform_12, window_bounds = array<i64: 128, 512>}, {pipeline_mode = #tpu.pipeline_mode<synchronous>, transform_indices = @transform_13, window_bounds = array<i64: 128, 512>}, {pipeline_mode = #tpu.pipeline_mode<synchronous>, transform_indices = @transform_14, window_bounds = array<i64: 1, 512>}, {pipeline_mode = #tpu.pipeline_mode<synchronous>, transform_indices = @transform_15, window_bounds = array<i64: 512, 256>}, {pipeline_mode = #tpu.pipeline_mode<synchronous>, transform_indices = @transform_16, window_bounds = array<i64: 1, 256>}, {transform_indices = @transform_17, window_bounds = array<i64: 8, 256>}]} {
    %c0 = arith.constant 0 : index
    %c0_0 = arith.constant 0 : index
    %0 = vector.load %arg1[%c0, %c0_0] : memref<8x128xf32, #tpu.memory_space<vmem>>, vector<8x128xf32>
    %1 = arith.truncf %0 : vector<8x128xf32> to vector<8x128xbf16>
    %c0_1 = arith.constant 0 : index
    %c0_2 = arith.constant 0 : index
    %2 = vector.load %arg4[%c0_1, %c0_2] : memref<128x512xbf16, #tpu.memory_space<vmem>>, vector<128x512xbf16>
    %cst = arith.constant dense<0.000000e+00> : vector<8x512xf32>
    %3 = tpu.matmul %1, %2, %cst {dimension_numbers = #tpu.dot_dimension_numbers<[1], [0], [0], [1], [0, 0, 1, 1], [], []>} : vector<8x128xbf16>, vector<128x512xbf16>, vector<8x512xf32> -> vector<8x512xf32>
    %c0_3 = arith.constant 0 : index
    %c0_4 = arith.constant 0 : index
    %4 = vector.load %arg5[%c0_3, %c0_4] : memref<1x512xf32, #tpu.memory_space<vmem>>, vector<1x512xf32>
    %5 = vector.broadcast %4 : vector<1x512xf32> to vector<8x512xf32>
    %6 = arith.addf %3, %5 : vector<8x512xf32>
    %cst_5 = arith.constant 0.000000e+00 : f32
    %7 = vector.broadcast %cst_5 : f32 to vector<8x512xf32>
    %8 = arith.maximumf %6, %7 : vector<8x512xf32>
    %9 = arith.truncf %8 : vector<8x512xf32> to vector<8x512xbf16>
    %c0_6 = arith.constant 0 : index
    %c0_7 = arith.constant 0 : index
    %10 = vector.load %arg6[%c0_6, %c0_7] : memref<512x128xbf16, #tpu.memory_space<vmem>>, vector<512x128xbf16>
    %cst_8 = arith.constant dense<0.000000e+00> : vector<8x128xf32>
    %11 = tpu.matmul %9, %10, %cst_8 {dimension_numbers = #tpu.dot_dimension_numbers<[1], [0], [0], [1], [0, 0, 1, 1], [], []>} : vector<8x512xbf16>, vector<512x128xbf16>, vector<8x128xf32> -> vector<8x128xf32>
    %c0_9 = arith.constant 0 : index
    %c0_10 = arith.constant 0 : index
    %12 = vector.load %arg7[%c0_9, %c0_10] : memref<1x128xf32, #tpu.memory_space<vmem>>, vector<1x128xf32>
    %13 = vector.broadcast %12 : vector<1x128xf32> to vector<8x128xf32>
    %14 = arith.addf %11, %13 : vector<8x128xf32>
    %c0_11 = arith.constant 0 : index
    %c0_12 = arith.constant 0 : index
    %15 = vector.load %arg2[%c0_11, %c0_12] : memref<128x8xf32, #tpu.memory_space<vmem>>, vector<128x8xf32>
    %16 = arith.truncf %15 : vector<128x8xf32> to vector<128x8xbf16>
    %c0_13 = arith.constant 0 : index
    %c0_14 = arith.constant 0 : index
    %17 = vector.load %arg8[%c0_13, %c0_14] : memref<8x128xbf16, #tpu.memory_space<vmem>>, vector<8x128xbf16>
    %cst_15 = arith.constant dense<0.000000e+00> : vector<128x128xf32>
    %18 = tpu.matmul %16, %17, %cst_15 {dimension_numbers = #tpu.dot_dimension_numbers<[1], [0], [0], [1], [0, 0, 1, 1], [], []>} : vector<128x8xbf16>, vector<8x128xbf16>, vector<128x128xf32> -> vector<128x128xf32>
    %c0_16 = arith.constant 0 : index
    %c0_17 = arith.constant 0 : index
    %19 = vector.load %arg9[%c0_16, %c0_17] : memref<1x128xf32, #tpu.memory_space<vmem>>, vector<1x128xf32>
    %20 = vector.broadcast %19 : vector<1x128xf32> to vector<128x128xf32>
    %21 = arith.addf %18, %20 : vector<128x128xf32>
    %cst_18 = arith.constant 0.000000e+00 : f32
    %22 = vector.broadcast %cst_18 : f32 to vector<128x128xf32>
    %23 = arith.maximumf %21, %22 : vector<128x128xf32>
    %24 = arith.truncf %23 : vector<128x128xf32> to vector<128x128xbf16>
    %c0_19 = arith.constant 0 : index
    %c0_20 = arith.constant 0 : index
    %25 = vector.load %arg10[%c0_19, %c0_20] : memref<128x128xbf16, #tpu.memory_space<vmem>>, vector<128x128xbf16>
    %cst_21 = arith.constant dense<0.000000e+00> : vector<128x128xf32>
    %26 = tpu.matmul %24, %25, %cst_21 {dimension_numbers = #tpu.dot_dimension_numbers<[1], [0], [0], [1], [0, 0, 1, 1], [], []>} : vector<128x128xbf16>, vector<128x128xbf16>, vector<128x128xf32> -> vector<128x128xf32>
    %c0_22 = arith.constant 0 : index
    %c0_23 = arith.constant 0 : index
    %27 = vector.load %arg11[%c0_22, %c0_23] : memref<1x128xf32, #tpu.memory_space<vmem>>, vector<1x128xf32>
    %28 = vector.broadcast %27 : vector<1x128xf32> to vector<128x128xf32>
    %29 = arith.addf %26, %28 : vector<128x128xf32>
    %cst_24 = arith.constant 0.000000e+00 : f32
    %30 = vector.broadcast %cst_24 : f32 to vector<128x128xf32>
    %31 = arith.maximumf %29, %30 : vector<128x128xf32>
    %32 = vector.shape_cast %31 : vector<128x128xf32> to vector<8x16x128xf32>
    %cst_25 = arith.constant dense<0.000000e+00> : vector<8x128xf32>
    %33 = vector.multi_reduction <add>, %32, %cst_25 [1] : vector<8x16x128xf32> to vector<8x128xf32>
    %cst_26 = arith.constant 6.250000e-02 : f32
    %34 = vector.broadcast %cst_26 : f32 to vector<8x128xf32>
    %35 = arith.mulf %33, %34 : vector<8x128xf32>
    %36 = arith.truncf %14 : vector<8x128xf32> to vector<8x128xbf16>
    %c0_27 = arith.constant 0 : index
    %c0_28 = arith.constant 0 : index
    %37 = vector.load %arg12[%c0_27, %c0_28] : memref<128x512xbf16, #tpu.memory_space<vmem>>, vector<128x512xbf16>
    %cst_29 = arith.constant dense<0.000000e+00> : vector<8x512xf32>
    %38 = tpu.matmul %36, %37, %cst_29 {dimension_numbers = #tpu.dot_dimension_numbers<[1], [0], [0], [1], [0, 0, 1, 1], [], []>} : vector<8x128xbf16>, vector<128x512xbf16>, vector<8x512xf32> -> vector<8x512xf32>
    %39 = arith.truncf %35 : vector<8x128xf32> to vector<8x128xbf16>
    %c0_30 = arith.constant 0 : index
    %c0_31 = arith.constant 0 : index
    %40 = vector.load %arg13[%c0_30, %c0_31] : memref<128x512xbf16, #tpu.memory_space<vmem>>, vector<128x512xbf16>
    %cst_32 = arith.constant dense<0.000000e+00> : vector<8x512xf32>
    %41 = tpu.matmul %39, %40, %cst_32 {dimension_numbers = #tpu.dot_dimension_numbers<[1], [0], [0], [1], [0, 0, 1, 1], [], []>} : vector<8x128xbf16>, vector<128x512xbf16>, vector<8x512xf32> -> vector<8x512xf32>
    %42 = arith.addf %38, %41 : vector<8x512xf32>
    %c0_33 = arith.constant 0 : index
    %c0_34 = arith.constant 0 : index
    %43 = vector.load %arg3[%c0_33, %c0_34] : memref<8x128xf32, #tpu.memory_space<vmem>>, vector<8x128xf32>
    %44 = arith.truncf %43 : vector<8x128xf32> to vector<8x128xbf16>
    %c0_35 = arith.constant 0 : index
    %c0_36 = arith.constant 0 : index
    %45 = vector.load %arg14[%c0_35, %c0_36] : memref<128x512xbf16, #tpu.memory_space<vmem>>, vector<128x512xbf16>
    %cst_37 = arith.constant dense<0.000000e+00> : vector<8x512xf32>
    %46 = tpu.matmul %44, %45, %cst_37 {dimension_numbers = #tpu.dot_dimension_numbers<[1], [0], [0], [1], [0, 0, 1, 1], [], []>} : vector<8x128xbf16>, vector<128x512xbf16>, vector<8x512xf32> -> vector<8x512xf32>
    %47 = arith.addf %42, %46 : vector<8x512xf32>
    %c0_38 = arith.constant 0 : index
    %c0_39 = arith.constant 0 : index
    %48 = vector.load %arg15[%c0_38, %c0_39] : memref<1x512xf32, #tpu.memory_space<vmem>>, vector<1x512xf32>
    %49 = vector.broadcast %48 : vector<1x512xf32> to vector<8x512xf32>
    %50 = arith.addf %47, %49 : vector<8x512xf32>
    %cst_40 = arith.constant 0.000000e+00 : f32
    %51 = vector.broadcast %cst_40 : f32 to vector<8x512xf32>
    %52 = arith.maximumf %50, %51 : vector<8x512xf32>
    %53 = arith.truncf %52 : vector<8x512xf32> to vector<8x512xbf16>
    %c0_41 = arith.constant 0 : index
    %c0_42 = arith.constant 0 : index
    %54 = vector.load %arg16[%c0_41, %c0_42] : memref<512x256xbf16, #tpu.memory_space<vmem>>, vector<512x256xbf16>
    %cst_43 = arith.constant dense<0.000000e+00> : vector<8x256xf32>
    %55 = tpu.matmul %53, %54, %cst_43 {dimension_numbers = #tpu.dot_dimension_numbers<[1], [0], [0], [1], [0, 0, 1, 1], [], []>} : vector<8x512xbf16>, vector<512x256xbf16>, vector<8x256xf32> -> vector<8x256xf32>
    %c0_44 = arith.constant 0 : index
    %c0_45 = arith.constant 0 : index
    %56 = vector.load %arg17[%c0_44, %c0_45] : memref<1x256xf32, #tpu.memory_space<vmem>>, vector<1x256xf32>
    %57 = vector.broadcast %56 : vector<1x256xf32> to vector<8x256xf32>
    %58 = arith.addf %55, %57 : vector<8x256xf32>
    %c0_46 = arith.constant 0 : index
    %c0_47 = arith.constant 0 : index
    %59 = vector.load %arg18[%c0_46, %c0_47] : memref<8x256xf32, #tpu.memory_space<vmem>>, vector<8x256xf32>
    tpu.vector_store %arg18[%c0_46, %c0_47], %58 {strides = array<i32>} : memref<8x256xf32, #tpu.memory_space<vmem>>, vector<8x256xf32>,
    return
  }
  func.func @transform_0(%arg0: i32) -> (i32, i32) {
    %c0_i32 = arith.constant 0 : i32
    %c0_i32_0 = arith.constant 0 : i32
    return %arg0, %c0_i32 : i32, i32
  }
  func.func @transform_1(%arg0: i32) -> (i32, i32) {
    %c0_i32 = arith.constant 0 : i32
    %c0_i32_0 = arith.constant 0 : i32
    return %arg0, %c0_i32 : i32, i32
  }
  func.func @transform_2(%arg0: i32) -> (i32, i32) {
    %c0_i32 = arith.constant 0 : i32
    %c0_i32_0 = arith.constant 0 : i32
    return %arg0, %c0_i32 : i32, i32
  }
  func.func @transform_3(%arg0: i32) -> (i32, i32) {
    %c0_i32 = arith.constant 0 : i32
    %c0_i32_0 = arith.constant 0 : i32
    %c0_i32_1 = arith.constant 0 : i32
    return %c0_i32, %c0_i32_0 : i32, i32
  }
  func.func @transform_4(%arg0: i32) -> (i32, i32) {
    %c0_i32 = arith.constant 0 : i32
    %c0_i32_0 = arith.constant 0 : i32
    %c0_i32_1 = arith.constant 0 : i32
    return %c0_i32, %c0_i32_0 : i32, i32
  }
  func.func @transform_5(%arg0: i32) -> (i32, i32) {
    %c0_i32 = arith.constant 0 : i32
    %c0_i32_0 = arith.constant 0 : i32
    %c0_i32_1 = arith.constant 0 : i32
    return %c0_i32, %c0_i32_0 : i32, i32
  }
  func.func @transform_6(%arg0: i32) -> (i32, i32) {
    %c0_i32 = arith.constant 0 : i32
    %c0_i32_0 = arith.constant 0 : i32
    %c0_i32_1 = arith.constant 0 : i32
    return %c0_i32, %c0_i32_0 : i32, i32
  }
  func.func @transform_7(%arg0: i32) -> (i32, i32) {
    %c0_i32 = arith.constant 0 : i32
    %c0_i32_0 = arith.constant 0 : i32
    %c0_i32_1 = arith.constant 0 : i32
    return %c0_i32, %c0_i32_0 : i32, i32
  }
  func.func @transform_8(%arg0: i32) -> (i32, i32) {
    %c0_i32 = arith.constant 0 : i32
    %c0_i32_0 = arith.constant 0 : i32
    %c0_i32_1 = arith.constant 0 : i32
    return %c0_i32, %c0_i32_0 : i32, i32
  }
  func.func @transform_9(%arg0: i32) -> (i32, i32) {
    %c0_i32 = arith.constant 0 : i32
    %c0_i32_0 = arith.constant 0 : i32
    %c0_i32_1 = arith.constant 0 : i32
    return %c0_i32, %c0_i32_0 : i32, i32
  }
  func.func @transform_10(%arg0: i32) -> (i32, i32) {
    %c0_i32 = arith.constant 0 : i32
    %c0_i32_0 = arith.constant 0 : i32
    %c0_i32_1 = arith.constant 0 : i32
    return %c0_i32, %c0_i32_0 : i32, i32
  }
  func.func @transform_11(%arg0: i32) -> (i32, i32) {
    %c0_i32 = arith.constant 0 : i32
    %c0_i32_0 = arith.constant 0 : i32
    %c0_i32_1 = arith.constant 0 : i32
    return %c0_i32, %c0_i32_0 : i32, i32
  }
  func.func @transform_12(%arg0: i32) -> (i32, i32) {
    %c0_i32 = arith.constant 0 : i32
    %c0_i32_0 = arith.constant 0 : i32
    %c0_i32_1 = arith.constant 0 : i32
    return %c0_i32, %c0_i32_0 : i32, i32
  }
  func.func @transform_13(%arg0: i32) -> (i32, i32) {
    %c0_i32 = arith.constant 0 : i32
    %c0_i32_0 = arith.constant 0 : i32
    %c0_i32_1 = arith.constant 0 : i32
    return %c0_i32, %c0_i32_0 : i32, i32
  }
  func.func @transform_14(%arg0: i32) -> (i32, i32) {
    %c0_i32 = arith.constant 0 : i32
    %c0_i32_0 = arith.constant 0 : i32
    %c0_i32_1 = arith.constant 0 : i32
    return %c0_i32, %c0_i32_0 : i32, i32
  }
  func.func @transform_15(%arg0: i32) -> (i32, i32) {
    %c0_i32 = arith.constant 0 : i32
    %c0_i32_0 = arith.constant 0 : i32
    %c0_i32_1 = arith.constant 0 : i32
    return %c0_i32, %c0_i32_0 : i32, i32
  }
  func.func @transform_16(%arg0: i32) -> (i32, i32) {
    %c0_i32 = arith.constant 0 : i32
    %c0_i32_0 = arith.constant 0 : i32
    %c0_i32_1 = arith.constant 0 : i32
    return %c0_i32, %c0_i32_0 : i32, i32
  }
  func.func @transform_17(%arg0: i32) -> (i32, i32) {
    %c0_i32 = arith.constant 0 : i32
    %c0_i32_0 = arith.constant 0 : i32
    return %arg0, %c0_i32 : i32, i32
  }
}

</mosaic_0001>

<llo_original>
// kernel: tpu_custom_call.1
$region0: #{tpu_custom_call.1}
  #allocation0 [shape = 'u32[]', space=smem, size = 0x4, offset = 0x4, fixed_abs, tag = 'smem constant byte address 0x4 - core index']
  #allocation1 [shape = 'u32[72,128]{1,0:T(1,128)}', space=vmem, size = 0x9000, scoped, tag = 'internal scratch']
  %s0 = inlined_call_operand.vmem [shape: f32[8,128], index: 0, kind: input, shape index: {}]
  %s1 = inlined_call_operand.vmem [shape: f32[128,8], index: 1, kind: input, shape index: {}]
  %s2 = inlined_call_operand.vmem [shape: f32[8,128], index: 2, kind: input, shape index: {}]
  %s3 = inlined_call_operand.hbm [shape: bf16[128,512], index: 3, kind: input, shape index: {}]
  %s4 = inlined_call_operand.vmem [shape: f32[1,512], index: 4, kind: input, shape index: {}]
  %s5 = inlined_call_operand.hbm [shape: bf16[512,128], index: 5, kind: input, shape index: {}]
  %s6 = inlined_call_operand.vmem [shape: f32[1,128], index: 6, kind: input, shape index: {}]
  %s7 = inlined_call_operand.vmem [shape: bf16[8,128], index: 7, kind: input, shape index: {}]
  %s8 = inlined_call_operand.vmem [shape: f32[1,128], index: 8, kind: input, shape index: {}]
  %s9 = inlined_call_operand.vmem [shape: bf16[128,128], index: 9, kind: input, shape index: {}]
  %s10 = inlined_call_operand.vmem [shape: f32[1,128], index: 10, kind: input, shape index: {}]
  %s11 = inlined_call_operand.hbm [shape: bf16[128,512], index: 11, kind: input, shape index: {}]
  %s12 = inlined_call_operand.hbm [shape: bf16[128,512], index: 12, kind: input, shape index: {}]
  %s13 = inlined_call_operand.hbm [shape: bf16[128,512], index: 13, kind: input, shape index: {}]
  %s14 = inlined_call_operand.vmem [shape: f32[1,512], index: 14, kind: input, shape index: {}]
  %s15 = inlined_call_operand.hbm [shape: bf16[512,256], index: 15, kind: input, shape index: {}]
  %s16 = inlined_call_operand.vmem [shape: f32[1,256], index: 16, kind: input, shape index: {}]
  %s17 = inlined_call_operand.hbm [shape: f32[8,256], index: 17, kind: output, shape index: {}]
  %s18 = sld [smem:[#allocation0]]
  $region102: #{tpu_custom_call.1} parent=0
    _
  %s20 = ssub.s32 1, %s18
  %s21 = scalar_select 0, %s20, %s18
  $region1: #{tpu_custom_call.1} parent=0
    #allocation2 [shape = 'u8[131072]{0}', space=vmem, size = 0x20000, scoped, tag = 'input window, operand 3, single buffered']
    #allocation3 [shape = 's32[1]{0}', space=sflag, size = 0x4, scoped, tag = 'scoped memory for tpu_custom_call.1']
    #allocation4 [shape = 's32[1]{0}', space=sflag, size = 0x4, scoped, tag = 'scoped memory for tpu_custom_call.1']
    #allocation5 [shape = 'u8[131072]{0}', space=vmem, size = 0x20000, scoped, tag = 'input window, operand 5, single buffered']
    #allocation6 [shape = 's32[1]{0}', space=sflag, size = 0x4, scoped, tag = 'scoped memory for tpu_custom_call.1']
    #allocation7 [shape = 'u8[131072]{0}', space=vmem, size = 0x20000, scoped, tag = 'input window, operand 11, single buffered']
    #allocation8 [shape = 'u8[131072]{0}', space=vmem, size = 0x20000, scoped, tag = 'input window, operand 12, single buffered']
    #allocation9 [shape = 's32[1]{0}', space=sflag, size = 0x4, scoped, tag = 'scoped memory for tpu_custom_call.1']
    #allocation10 [shape = 'u8[131072]{0}', space=vmem, size = 0x20000, scoped, tag = 'input window, operand 13, single buffered']
    #allocation11 [shape = 'u8[262144]{0}', space=vmem, size = 0x40000, scoped, tag = 'input window, operand 15, single buffered']
    #allocation12 [shape = 's32[1]{0}', space=sflag, size = 0x4, scoped, tag = 'scoped memory for tpu_custom_call.1']
    #allocation13 [shape = 'u8[8192]{0}', space=vmem, size = 0x2000, scoped, tag = 'output window, operand 0, single buffered']
    %22 = vsyncpa [#allocation3], 0
    %23 = vsyncpa [#allocation6], 0
    %24 = vsyncpa [#allocation9], 0
    %25 = vsyncpa [#allocation12], 0
    %26 = vsyncpa [#allocation4], 0
    // Predicated region
    $region2: #{tpu_custom_call.1} parent=1 // pred_check
      _
    $region3: #{tpu_custom_call.1} parent=1 // pred_check_branch
      %28 = sbr.rel (0) target = $region5
    $region4: #{tpu_custom_call.1} parent=1 // pred_region
      _
    $region5: #{tpu_custom_call.1} parent=1 // pred_fallthru
      _
    // Predicated region
    $region6: #{tpu_custom_call.1} parent=1 // pred_check
      _
    $region7: #{tpu_custom_call.1} parent=1 // pred_check_branch
      %30 = sbr.rel (0) target = $region9
    $region8: #{tpu_custom_call.1} parent=1 // pred_region
      _
    $region9: #{tpu_custom_call.1} parent=1 // pred_fallthru
      _
    // Predicated region
    $region10: #{tpu_custom_call.1} parent=1 // pred_check
      _
    $region11: #{tpu_custom_call.1} parent=1 // pred_check_branch
      %32 = sbr.rel (0) target = $region13
    $region12: #{tpu_custom_call.1} parent=1 // pred_region
      _
    $region13: #{tpu_custom_call.1} parent=1 // pred_fallthru
      _
    // Predicated region
    $region14: #{tpu_custom_call.1} parent=1 // pred_check
      _
    $region15: #{tpu_custom_call.1} parent=1 // pred_check_branch
      %34 = sbr.rel (0) target = $region17
    $region16: #{tpu_custom_call.1} parent=1 // pred_region
      %36 = vsyncadd [#allocation3], 0
      %s37 = sshll.u32 %s3, 4
      %s38 = int_to_ptr.hbm [resolvable:$true] %s37
      %s39 = sshll.u32 [#allocation2], 4
      %s40 = int_to_ptr.vmem [resolvable:$true] %s39
      %45 = dma.hbm_to_vmem [thread:$0]  %s38, 4096, %s40, [#allocation3], 256, 256, 16
    $region17: #{tpu_custom_call.1} parent=1 // pred_fallthru
      _
    // Predicated region
    $region18: #{tpu_custom_call.1} parent=1 // pred_check
      _
    $region19: #{tpu_custom_call.1} parent=1 // pred_check_branch
      %47 = sbr.rel (0) target = $region21
    $region20: #{tpu_custom_call.1} parent=1 // pred_region
      _
    $region21: #{tpu_custom_call.1} parent=1 // pred_fallthru
      _
    // Predicated region
    $region22: #{tpu_custom_call.1} parent=1 // pred_check
      _
    $region23: #{tpu_custom_call.1} parent=1 // pred_check_branch
      %49 = sbr.rel (0) target = $region25
    $region24: #{tpu_custom_call.1} parent=1 // pred_region
      %51 = vsyncadd [#allocation6], 0
      %s52 = sshll.u32 %s5, 4
      %s53 = int_to_ptr.hbm [resolvable:$true] %s52
      %s54 = sshll.u32 [#allocation5], 4
      %s55 = int_to_ptr.vmem [resolvable:$true] %s54
      %60 = dma.hbm_to_vmem [thread:$0]  %s53, 4096, %s55, [#allocation6], 64, 64, 4
    $region25: #{tpu_custom_call.1} parent=1 // pred_fallthru
      _
    // Predicated region
    $region26: #{tpu_custom_call.1} parent=1 // pred_check
      _
    $region27: #{tpu_custom_call.1} parent=1 // pred_check_branch
      %62 = sbr.rel (0) target = $region29
    $region28: #{tpu_custom_call.1} parent=1 // pred_region
      _
    $region29: #{tpu_custom_call.1} parent=1 // pred_fallthru
      _
    // Predicated region
    $region30: #{tpu_custom_call.1} parent=1 // pred_check
      _
    $region31: #{tpu_custom_call.1} parent=1 // pred_check_branch
      %64 = sbr.rel (0) target = $region33
    $region32: #{tpu_custom_call.1} parent=1 // pred_region
      _
    $region33: #{tpu_custom_call.1} parent=1 // pred_fallthru
      _
    // Predicated region
    $region34: #{tpu_custom_call.1} parent=1 // pred_check
      _
    $region35: #{tpu_custom_call.1} parent=1 // pred_check_branch
      %66 = sbr.rel (0) target = $region37
    $region36: #{tpu_custom_call.1} parent=1 // pred_region
      _
    $region37: #{tpu_custom_call.1} parent=1 // pred_fallthru
      _
    // Predicated region
    $region38: #{tpu_custom_call.1} parent=1 // pred_check
      _
    $region39: #{tpu_custom_call.1} parent=1 // pred_check_branch
      %68 = sbr.rel (0) target = $region41
    $region40: #{tpu_custom_call.1} parent=1 // pred_region
      _
    $region41: #{tpu_custom_call.1} parent=1 // pred_fallthru
      _
    // Predicated region
    $region42: #{tpu_custom_call.1} parent=1 // pred_check
      _
    $region43: #{tpu_custom_call.1} parent=1 // pred_check_branch
      %70 = sbr.rel (0) target = $region45
    $region44: #{tpu_custom_call.1} parent=1 // pred_region
      _
    $region45: #{tpu_custom_call.1} parent=1 // pred_fallthru
      _
    // Predicated region
    $region46: #{tpu_custom_call.1} parent=1 // pred_check
      _
    $region47: #{tpu_custom_call.1} parent=1 // pred_check_branch
      %72 = sbr.rel (0) target = $region49
    $region48: #{tpu_custom_call.1} parent=1 // pred_region
      %74 = vsyncadd [#allocation6], 0
      %s75 = sshll.u32 %s11, 4
      %s76 = int_to_ptr.hbm [resolvable:$true] %s75
      %s77 = sshll.u32 [#allocation7], 4
      %s78 = int_to_ptr.vmem [resolvable:$true] %s77
      %83 = dma.hbm_to_vmem [thread:$0]  %s76, 4096, %s78, [#allocation6], 256, 256, 16
    $region49: #{tpu_custom_call.1} parent=1 // pred_fallthru
      _
    // Predicated region
    $region50: #{tpu_custom_call.1} parent=1 // pred_check
      _
    $region51: #{tpu_custom_call.1} parent=1 // pred_check_branch
      %85 = sbr.rel (0) target = $region53
    $region52: #{tpu_custom_call.1} parent=1 // pred_region
      %87 = vsyncadd [#allocation9], 0
      %s88 = sshll.u32 %s12, 4
      %s89 = int_to_ptr.hbm [resolvable:$true] %s88
      %s90 = sshll.u32 [#allocation8], 4
      %s91 = int_to_ptr.vmem [resolvable:$true] %s90
      %96 = dma.hbm_to_vmem [thread:$0]  %s89, 4096, %s91, [#allocation9], 256, 256, 16
    $region53: #{tpu_custom_call.1} parent=1 // pred_fallthru
      _
    // Predicated region
    $region54: #{tpu_custom_call.1} parent=1 // pred_check
      _
    $region55: #{tpu_custom_call.1} parent=1 // pred_check_branch
      %98 = sbr.rel (0) target = $region57
    $region56: #{tpu_custom_call.1} parent=1 // pred_region
      %100 = vsyncadd [#allocation9], 0
      %s101 = sshll.u32 %s13, 4
      %s102 = int_to_ptr.hbm [resolvable:$true] %s101
      %s103 = sshll.u32 [#allocation10], 4
      %s104 = int_to_ptr.vmem [resolvable:$true] %s103
      %109 = dma.hbm_to_vmem [thread:$0]  %s102, 4096, %s104, [#allocation9], 256, 256, 16
    $region57: #{tpu_custom_call.1} parent=1 // pred_fallthru
      _
    // Predicated region
    $region58: #{tpu_custom_call.1} parent=1 // pred_check
      _
    $region59: #{tpu_custom_call.1} parent=1 // pred_check_branch
      %111 = sbr.rel (0) target = $region61
    $region60: #{tpu_custom_call.1} parent=1 // pred_region
      _
    $region61: #{tpu_custom_call.1} parent=1 // pred_fallthru
      _
    // Predicated region
    $region62: #{tpu_custom_call.1} parent=1 // pred_check
      _
    $region63: #{tpu_custom_call.1} parent=1 // pred_check_branch
      %113 = sbr.rel (0) target = $region65
    $region64: #{tpu_custom_call.1} parent=1 // pred_region
      %115 = vsyncadd [#allocation12], 0
      %s116 = sshll.u32 %s15, 4
      %s117 = int_to_ptr.hbm [resolvable:$true] %s116
      %s118 = sshll.u32 [#allocation11], 4
      %s119 = int_to_ptr.vmem [resolvable:$true] %s118
      %124 = dma.hbm_to_vmem [thread:$0]  %s117, 8192, %s119, [#allocation12], 128, 128, 8
    $region65: #{tpu_custom_call.1} parent=1 // pred_fallthru
      _
    // Predicated region
    $region66: #{tpu_custom_call.1} parent=1 // pred_check
      _
    $region67: #{tpu_custom_call.1} parent=1 // pred_check_branch
      %126 = sbr.rel (0) target = $region69
    $region68: #{tpu_custom_call.1} parent=1 // pred_region
      _
    $region69: #{tpu_custom_call.1} parent=1 // pred_fallthru
      _
    // Predicated region
    $region70: #{tpu_custom_call.1} parent=1 // pred_check
      _
    $region71: #{tpu_custom_call.1} parent=1 // pred_check_branch
      %128 = sbr.rel (0) target = $region73
    $region72: #{tpu_custom_call.1} parent=1 // pred_region
      %130 = dma.done [#allocation3], 4096
    $region73: #{tpu_custom_call.1} parent=1 // pred_fallthru
      _
    // Predicated region
    $region74: #{tpu_custom_call.1} parent=1 // pred_check
      _
    $region75: #{tpu_custom_call.1} parent=1 // pred_check_branch
      %132 = sbr.rel (0) target = $region77
    $region76: #{tpu_custom_call.1} parent=1 // pred_region
      %134 = dma.done [#allocation6], 4096
    $region77: #{tpu_custom_call.1} parent=1 // pred_fallthru
      _
    // Predicated region
    $region78: #{tpu_custom_call.1} parent=1 // pred_check
      _
    $region79: #{tpu_custom_call.1} parent=1 // pred_check_branch
      %136 = sbr.rel (0) target = $region81
    $region80: #{tpu_custom_call.1} parent=1 // pred_region
      %138 = dma.done [#allocation6], 4096
    $region81: #{tpu_custom_call.1} parent=1 // pred_fallthru
      _
    // Predicated region
    $region82: #{tpu_custom_call.1} parent=1 // pred_check
      _
    $region83: #{tpu_custom_call.1} parent=1 // pred_check_branch
      %140 = sbr.rel (0) target = $region85
    $region84: #{tpu_custom_call.1} parent=1 // pred_region
      %142 = dma.done [#allocation9], 4096
    $region85: #{tpu_custom_call.1} parent=1 // pred_fallthru
      _
    // Predicated region
    $region86: #{tpu_custom_call.1} parent=1 // pred_check
      _
    $region87: #{tpu_custom_call.1} parent=1 // pred_check_branch
      %144 = sbr.rel (0) target = $region89
    $region88: #{tpu_custom_call.1} parent=1 // pred_region
      %146 = dma.done [#allocation9], 4096
    $region89: #{tpu_custom_call.1} parent=1 // pred_fallthru
      _
    // Predicated region
    $region90: #{tpu_custom_call.1} parent=1 // pred_check
      _
    $region91: #{tpu_custom_call.1} parent=1 // pred_check_branch
      %148 = sbr.rel (0) target = $region93
    $region92: #{tpu_custom_call.1} parent=1 // pred_region
      %150 = dma.done [#allocation12], 8192
    $region93: #{tpu_custom_call.1} parent=1 // pred_fallthru
      _
    %v152 = vld [vmem:[%s0] sm:$0xff]
    %v153 = vpack.c.bf16 %v152, %v152
    %v154 = vld [vmem:[#allocation2] sm:$0xff]
    %v155 = vld [vmem:[#allocation2 + $0x8] sm:$0xff]
    %v156 = vld [vmem:[#allocation2 + $0x10] sm:$0xff]
    %v157 = vld [vmem:[#allocation2 + $0x18] sm:$0xff]
    %v158 = vld [vmem:[#allocation2 + $0x20] sm:$0xff]
    %v159 = vld [vmem:[#allocation2 + $0x28] sm:$0xff]
    %v160 = vld [vmem:[#allocation2 + $0x30] sm:$0xff]
    %v161 = vld [vmem:[#allocation2 + $0x38] sm:$0xff]
    %v162 = vld [vmem:[#allocation2 + $0x40] sm:$0xff]
    %v163 = vld [vmem:[#allocation2 + $0x48] sm:$0xff]
    %v164 = vld [vmem:[#allocation2 + $0x50] sm:$0xff]
    %v165 = vld [vmem:[#allocation2 + $0x58] sm:$0xff]
    %v166 = vld [vmem:[#allocation2 + $0x60] sm:$0xff]
    %v167 = vld [vmem:[#allocation2 + $0x68] sm:$0xff]
    %v168 = vld [vmem:[#allocation2 + $0x70] sm:$0xff]
    %v169 = vld [vmem:[#allocation2 + $0x78] sm:$0xff]
    %v170 = vld [vmem:[#allocation2 + $0x80] sm:$0xff]
    %v171 = vld [vmem:[#allocation2 + $0x88] sm:$0xff]
    %v172 = vld [vmem:[#allocation2 + $0x90] sm:$0xff]
    %v173 = vld [vmem:[#allocation2 + $0x98] sm:$0xff]
    %v174 = vld [vmem:[#allocation2 + $0xa0] sm:$0xff]
    %v175 = vld [vmem:[#allocation2 + $0xa8] sm:$0xff]
    %v176 = vld [vmem:[#allocation2 + $0xb0] sm:$0xff]
    %v177 = vld [vmem:[#allocation2 + $0xb8] sm:$0xff]
    %v178 = vld [vmem:[#allocation2 + $0xc0] sm:$0xff]
    %v179 = vld [vmem:[#allocation2 + $0xc8] sm:$0xff]
    %v180 = vld [vmem:[#allocation2 + $0xd0] sm:$0xff]
    %v181 = vld [vmem:[#allocation2 + $0xd8] sm:$0xff]
    %v182 = vld [vmem:[#allocation2 + $0xe0] sm:$0xff]
    %v183 = vld [vmem:[#allocation2 + $0xe8] sm:$0xff]
    %v184 = vld [vmem:[#allocation2 + $0xf0] sm:$0xff]
    %v185 = vld [vmem:[#allocation2 + $0xf8] sm:$0xff]
    %v186 = vld [vmem:[%s4] sm:$0xf]
    %v188 = vperm.slane %v186, 0
    %v189 = vperm.slane %v186, 1
    %v190 = vperm.slane %v186, 2
    %v191 = vperm.slane %v186, 3
    %v228 = vunpack.c.l.b16 %v154
    %v229 = vunpack.c.h.b16 %v154
    %v230 = vunpack.c.l.b16 %v155
    %v231 = vunpack.c.h.b16 %v155
    %v232 = vunpack.c.l.b16 %v156
    %v233 = vunpack.c.h.b16 %v156
    %v234 = vunpack.c.l.b16 %v157
    %v235 = vunpack.c.h.b16 %v157
    %v236 = vunpack.c.l.b16 %v158
    %v237 = vunpack.c.h.b16 %v158
    %v238 = vunpack.c.l.b16 %v159
    %v239 = vunpack.c.h.b16 %v159
    %v240 = vunpack.c.l.b16 %v160
    %v241 = vunpack.c.h.b16 %v160
    %v242 = vunpack.c.l.b16 %v161
    %v243 = vunpack.c.h.b16 %v161
    %v244 = vunpack.c.l.b16 %v162
    %v245 = vunpack.c.h.b16 %v162
    %v246 = vunpack.c.l.b16 %v163
    %v247 = vunpack.c.h.b16 %v163
    %v248 = vunpack.c.l.b16 %v164
    %v249 = vunpack.c.h.b16 %v164
    %v250 = vunpack.c.l.b16 %v165
    %v251 = vunpack.c.h.b16 %v165
    %v252 = vunpack.c.l.b16 %v166
    %v253 = vunpack.c.h.b16 %v166
    %v254 = vunpack.c.l.b16 %v167
    %v255 = vunpack.c.h.b16 %v167
    %v256 = vunpack.c.l.b16 %v168
    %v257 = vunpack.c.h.b16 %v168
    %v258 = vunpack.c.l.b16 %v169
    %v259 = vunpack.c.h.b16 %v169
    %v260 = vunpack.c.l.b16 %v170
    %v261 = vunpack.c.h.b16 %v170
    %v262 = vunpack.c.l.b16 %v171
    %v263 = vunpack.c.h.b16 %v171
    %v264 = vunpack.c.l.b16 %v172
    %v265 = vunpack.c.h.b16 %v172
    %v266 = vunpack.c.l.b16 %v173
    %v267 = vunpack.c.h.b16 %v173
    %v268 = vunpack.c.l.b16 %v174
    %v269 = vunpack.c.h.b16 %v174
    %v270 = vunpack.c.l.b16 %v175
    %v271 = vunpack.c.h.b16 %v175
    %v272 = vunpack.c.l.b16 %v176
    %v273 = vunpack.c.h.b16 %v176
    %v274 = vunpack.c.l.b16 %v177
    %v275 = vunpack.c.h.b16 %v177
    %v276 = vunpack.c.l.b16 %v178
    %v277 = vunpack.c.h.b16 %v178
    %v278 = vunpack.c.l.b16 %v179
    %v279 = vunpack.c.h.b16 %v179
    %v280 = vunpack.c.l.b16 %v180
    %v281 = vunpack.c.h.b16 %v180
    %v282 = vunpack.c.l.b16 %v181
    %v283 = vunpack.c.h.b16 %v181
    %v284 = vunpack.c.l.b16 %v182
    %v285 = vunpack.c.h.b16 %v182
    %v286 = vunpack.c.l.b16 %v183
    %v287 = vunpack.c.h.b16 %v183
    %v288 = vunpack.c.l.b16 %v184
    %v289 = vunpack.c.h.b16 %v184
    %v290 = vunpack.c.l.b16 %v185
    %v291 = vunpack.c.h.b16 %v185
    %v292 = vpack.c.b16 %v232, %v228
    %v293 = vpack.c.b16 %v233, %v229
    %v294 = vpack.c.b16 %v234, %v230
    %v295 = vpack.c.b16 %v235, %v231
    %v296 = vpack.c.b16 %v240, %v236
    %v297 = vpack.c.b16 %v241, %v237
    %v298 = vpack.c.b16 %v242, %v238
    %v299 = vpack.c.b16 %v243, %v239
    %v300 = vpack.c.b16 %v248, %v244
    %v301 = vpack.c.b16 %v249, %v245
    %v302 = vpack.c.b16 %v250, %v246
    %v303 = vpack.c.b16 %v251, %v247
    %v304 = vpack.c.b16 %v256, %v252
    %v305 = vpack.c.b16 %v257, %v253
    %v306 = vpack.c.b16 %v258, %v254
    %v307 = vpack.c.b16 %v259, %v255
    %v308 = vpack.c.b16 %v264, %v260
    %v309 = vpack.c.b16 %v265, %v261
    %v310 = vpack.c.b16 %v266, %v262
    %v311 = vpack.c.b16 %v267, %v263
    %v312 = vpack.c.b16 %v272, %v268
    %v313 = vpack.c.b16 %v273, %v269
    %v314 = vpack.c.b16 %v274, %v270
    %v315 = vpack.c.b16 %v275, %v271
    %v316 = vpack.c.b16 %v280, %v276
    %v317 = vpack.c.b16 %v281, %v277
    %v318 = vpack.c.b16 %v282, %v278
    %v319 = vpack.c.b16 %v283, %v279
    %v320 = vpack.c.b16 %v288, %v284
    %v321 = vpack.c.b16 %v289, %v285
    %v322 = vpack.c.b16 %v290, %v286
    %v323 = vpack.c.b16 %v291, %v287
    %356 = vmatpush.bf16.msra.mxu0 %v320
    %357 = vmatpush.bf16.msra.mxu0 %v316
    %358 = vmatpush.bf16.msra.mxu0 %v312
    %359 = vmatpush.bf16.msra.mxu0 %v308
    %360 = vmatpush.bf16.msra.mxu0 %v304
    %361 = vmatpush.bf16.msra.mxu0 %v300
    %362 = vmatpush.bf16.msra.mxu0 %v296
    %363 = vmatpush.bf16.msra.mxu0 %v292
    %364 = vmatmul.bf16.gmra.mxu0 %v153
    %v365 = vpop.f32.mrf.mxu0
    %v366 = vadd.f32 %v188, %v365
    %v367 = vpop.f32.mrf.mxu0
    %368 = vdwg.mxu0
    %369 = vmatpush.bf16.msra.mxu0 %v321
    %370 = vmatpush.bf16.msra.mxu0 %v317
    %371 = vmatpush.bf16.msra.mxu0 %v313
    %372 = vmatpush.bf16.msra.mxu0 %v309
    %373 = vmatpush.bf16.msra.mxu0 %v305
    %374 = vmatpush.bf16.msra.mxu0 %v301
    %375 = vmatpush.bf16.msra.mxu0 %v297
    %376 = vmatpush.bf16.msra.mxu0 %v293
    %377 = vmatmul.bf16.gmra.mxu0 %v153
    %v378 = vpop.f32.mrf.mxu0
    %v379 = vadd.f32 %v189, %v378
    %v380 = vpop.f32.mrf.mxu0
    %381 = vdwg.mxu0
    %382 = vmatpush.bf16.msra.mxu0 %v322
    %383 = vmatpush.bf16.msra.mxu0 %v318
    %384 = vmatpush.bf16.msra.mxu0 %v314
    %385 = vmatpush.bf16.msra.mxu0 %v310
    %386 = vmatpush.bf16.msra.mxu0 %v306
    %387 = vmatpush.bf16.msra.mxu0 %v302
    %388 = vmatpush.bf16.msra.mxu0 %v298
    %389 = vmatpush.bf16.msra.mxu0 %v294
    %390 = vmatmul.bf16.gmra.mxu0 %v153
    %v391 = vpop.f32.mrf.mxu0
    %v392 = vadd.f32 %v190, %v391
    %v393 = vpop.f32.mrf.mxu0
    %394 = vdwg.mxu0
    %395 = vmatpush.bf16.msra.mxu0 %v323
    %396 = vmatpush.bf16.msra.mxu0 %v319
    %397 = vmatpush.bf16.msra.mxu0 %v315
    %398 = vmatpush.bf16.msra.mxu0 %v311
    %399 = vmatpush.bf16.msra.mxu0 %v307
    %400 = vmatpush.bf16.msra.mxu0 %v303
    %401 = vmatpush.bf16.msra.mxu0 %v299
    %402 = vmatpush.bf16.msra.mxu0 %v295
    %403 = vmatmul.bf16.gmra.mxu0 %v153
    %v404 = vpop.f32.mrf.mxu0
    %v405 = vadd.f32 %v191, %v404
    %v406 = vpop.f32.mrf.mxu0
    %407 = vdwg.mxu0
    %v408 = vmax.f32 %v366, 0.0
    %v409 = vmax.f32 %v379, 0.0
    %v410 = vmax.f32 %v392, 0.0
    %v411 = vmax.f32 %v405, 0.0
    %v412 = vpack.c.bf16 %v408, %v408
    %v413 = vpack.c.bf16 %v409, %v409
    %v414 = vpack.c.bf16 %v410, %v410
    %v415 = vpack.c.bf16 %v411, %v411
    %v416 = vld [vmem:[#allocation5] sm:$0xf]
    %v417 = vld [vmem:[#allocation5 + $0x4] sm:$0xf]
    %v418 = vld [vmem:[#allocation5 + $0x8] sm:$0xf]
    %v419 = vld [vmem:[#allocation5 + $0xc] sm:$0xf]
    %v420 = vld [vmem:[#allocation5 + $0x10] sm:$0xf]
    %v421 = vld [vmem:[#allocation5 + $0x14] sm:$0xf]
    %v422 = vld [vmem:[#allocation5 + $0x18] sm:$0xf]
    %v423 = vld [vmem:[#allocation5 + $0x1c] sm:$0xf]
    %v424 = vld [vmem:[#allocation5 + $0x20] sm:$0xf]
    %v425 = vld [vmem:[#allocation5 + $0x24] sm:$0xf]
    %v426 = vld [vmem:[#allocation5 + $0x28] sm:$0xf]
    %v427 = vld [vmem:[#allocation5 + $0x2c] sm:$0xf]
    %v428 = vld [vmem:[#allocation5 + $0x30] sm:$0xf]
    %v429 = vld [vmem:[#allocation5 + $0x34] sm:$0xf]
    %v430 = vld [vmem:[#allocation5 + $0x38] sm:$0xf]
    %v431 = vld [vmem:[#allocation5 + $0x3c] sm:$0xf]
    %v432 = vld [vmem:[#allocation5 + $0x40] sm:$0xf]
    %v433 = vld [vmem:[#allocation5 + $0x44] sm:$0xf]
    %v434 = vld [vmem:[#allocation5 + $0x48] sm:$0xf]
    %v435 = vld [vmem:[#allocation5 + $0x4c] sm:$0xf]
    %v436 = vld [vmem:[#allocation5 + $0x50] sm:$0xf]
    %v437 = vld [vmem:[#allocation5 + $0x54] sm:$0xf]
    %v438 = vld [vmem:[#allocation5 + $0x58] sm:$0xf]
    %v439 = vld [vmem:[#allocation5 + $0x5c] sm:$0xf]
    %v440 = vld [vmem:[#allocation5 + $0x60] sm:$0xf]
    %v441 = vld [vmem:[#allocation5 + $0x64] sm:$0xf]
    %v442 = vld [vmem:[#allocation5 + $0x68] sm:$0xf]
    %v443 = vld [vmem:[#allocation5 + $0x6c] sm:$0xf]
    %v444 = vld [vmem:[#allocation5 + $0x70] sm:$0xf]
    %v445 = vld [vmem:[#allocation5 + $0x74] sm:$0xf]
    %v446 = vld [vmem:[#allocation5 + $0x78] sm:$0xf]
    %v447 = vld [vmem:[#allocation5 + $0x7c] sm:$0xf]
    %v448 = vld [vmem:[#allocation5 + $0x80] sm:$0xf]
    %v449 = vld [vmem:[#allocation5 + $0x84] sm:$0xf]
    %v450 = vld [vmem:[#allocation5 + $0x88] sm:$0xf]
    %v451 = vld [vmem:[#allocation5 + $0x8c] sm:$0xf]
    %v452 = vld [vmem:[#allocation5 + $0x90] sm:$0xf]
    %v453 = vld [vmem:[#allocation5 + $0x94] sm:$0xf]
    %v454 = vld [vmem:[#allocation5 + $0x98] sm:$0xf]
    %v455 = vld [vmem:[#allocation5 + $0x9c] sm:$0xf]
    %v456 = vld [vmem:[#allocation5 + $0xa0] sm:$0xf]
    %v457 = vld [vmem:[#allocation5 + $0xa4] sm:$0xf]
    %v458 = vld [vmem:[#allocation5 + $0xa8] sm:$0xf]
    %v459 = vld [vmem:[#allocation5 + $0xac] sm:$0xf]
    %v460 = vld [vmem:[#allocation5 + $0xb0] sm:$0xf]
    %v461 = vld [vmem:[#allocation5 + $0xb4] sm:$0xf]
    %v462 = vld [vmem:[#allocation5 + $0xb8] sm:$0xf]
    %v463 = vld [vmem:[#allocation5 + $0xbc] sm:$0xf]
    %v464 = vld [vmem:[#allocation5 + $0xc0] sm:$0xf]
    %v465 = vld [vmem:[#allocation5 + $0xc4] sm:$0xf]
    %v466 = vld [vmem:[#allocation5 + $0xc8] sm:$0xf]
    %v467 = vld [vmem:[#allocation5 + $0xcc] sm:$0xf]
    %v468 = vld [vmem:[#allocation5 + $0xd0] sm:$0xf]
    %v469 = vld [vmem:[#allocation5 + $0xd4] sm:$0xf]
    %v470 = vld [vmem:[#allocation5 + $0xd8] sm:$0xf]
    %v471 = vld [vmem:[#allocation5 + $0xdc] sm:$0xf]
    %v472 = vld [vmem:[#allocation5 + $0xe0] sm:$0xf]
    %v473 = vld [vmem:[#allocation5 + $0xe4] sm:$0xf]
    %v474 = vld [vmem:[#allocation5 + $0xe8] sm:$0xf]
    %v475 = vld [vmem:[#allocation5 + $0xec] sm:$0xf]
    %v476 = vld [vmem:[#allocation5 + $0xf0] sm:$0xf]
    %v477 = vld [vmem:[#allocation5 + $0xf4] sm:$0xf]
    %v478 = vld [vmem:[#allocation5 + $0xf8] sm:$0xf]
    %v479 = vld [vmem:[#allocation5 + $0xfc] sm:$0xf]
    %v480 = vld [vmem:[%s6] sm:$0x1]
    %v482 = vperm.slane %v480, 0
    %v548 = vunpack.c.l.b16 %v416
    %v549 = vunpack.c.l.b16 %v417
    %v550 = vunpack.c.l.b16 %v418
    %v551 = vunpack.c.l.b16 %v419
    %v552 = vunpack.c.l.b16 %v420
    %v553 = vunpack.c.l.b16 %v421
    %v554 = vunpack.c.l.b16 %v422
    %v555 = vunpack.c.l.b16 %v423
    %v556 = vunpack.c.l.b16 %v424
    %v557 = vunpack.c.l.b16 %v425
    %v558 = vunpack.c.l.b16 %v426
    %v559 = vunpack.c.l.b16 %v427
    %v560 = vunpack.c.l.b16 %v428
    %v561 = vunpack.c.l.b16 %v429
    %v562 = vunpack.c.l.b16 %v430
    %v563 = vunpack.c.l.b16 %v431
    %v564 = vunpack.c.l.b16 %v432
    %v565 = vunpack.c.l.b16 %v433
    %v566 = vunpack.c.l.b16 %v434
    %v567 = vunpack.c.l.b16 %v435
    %v568 = vunpack.c.l.b16 %v436
    %v569 = vunpack.c.l.b16 %v437
    %v570 = vunpack.c.l.b16 %v438
    %v571 = vunpack.c.l.b16 %v439
    %v572 = vunpack.c.l.b16 %v440
    %v573 = vunpack.c.l.b16 %v441
    %v574 = vunpack.c.l.b16 %v442
    %v575 = vunpack.c.l.b16 %v443
    %v576 = vunpack.c.l.b16 %v444
    %v577 = vunpack.c.l.b16 %v445
    %v578 = vunpack.c.l.b16 %v446
    %v579 = vunpack.c.l.b16 %v447
    %v580 = vunpack.c.l.b16 %v448
    %v581 = vunpack.c.l.b16 %v449
    %v582 = vunpack.c.l.b16 %v450
    %v583 = vunpack.c.l.b16 %v451
    %v584 = vunpack.c.l.b16 %v452
    %v585 = vunpack.c.l.b16 %v453
    %v586 = vunpack.c.l.b16 %v454
    %v587 = vunpack.c.l.b16 %v455
    %v588 = vunpack.c.l.b16 %v456
    %v589 = vunpack.c.l.b16 %v457
    %v590 = vunpack.c.l.b16 %v458
    %v591 = vunpack.c.l.b16 %v459
    %v592 = vunpack.c.l.b16 %v460
    %v593 = vunpack.c.l.b16 %v461
    %v594 = vunpack.c.l.b16 %v462
    %v595 = vunpack.c.l.b16 %v463
    %v596 = vunpack.c.l.b16 %v464
    %v597 = vunpack.c.l.b16 %v465
    %v598 = vunpack.c.l.b16 %v466
    %v599 = vunpack.c.l.b16 %v467
    %v600 = vunpack.c.l.b16 %v468
    %v601 = vunpack.c.l.b16 %v469
    %v602 = vunpack.c.l.b16 %v470
    %v603 = vunpack.c.l.b16 %v471
    %v604 = vunpack.c.l.b16 %v472
    %v605 = vunpack.c.l.b16 %v473
    %v606 = vunpack.c.l.b16 %v474
    %v607 = vunpack.c.l.b16 %v475
    %v608 = vunpack.c.l.b16 %v476
    %v609 = vunpack.c.l.b16 %v477
    %v610 = vunpack.c.l.b16 %v478
    %v611 = vunpack.c.l.b16 %v479
    %v612 = vpack.c.b16 %v549, %v548
    %v613 = vpack.c.b16 %v551, %v550
    %v614 = vpack.c.b16 %v553, %v552
    %v615 = vpack.c.b16 %v555, %v554
    %v616 = vpack.c.b16 %v557, %v556
    %v617 = vpack.c.b16 %v559, %v558
    %v618 = vpack.c.b16 %v561, %v560
    %v619 = vpack.c.b16 %v563, %v562
    %v620 = vpack.c.b16 %v565, %v564
    %v621 = vpack.c.b16 %v567, %v566
    %v622 = vpack.c.b16 %v569, %v568
    %v623 = vpack.c.b16 %v571, %v570
    %v624 = vpack.c.b16 %v573, %v572
    %v625 = vpack.c.b16 %v575, %v574
    %v626 = vpack.c.b16 %v577, %v576
    %v627 = vpack.c.b16 %v579, %v578
    %v628 = vpack.c.b16 %v581, %v580
    %v629 = vpack.c.b16 %v583, %v582
    %v630 = vpack.c.b16 %v585, %v584
    %v631 = vpack.c.b16 %v587, %v586
    %v632 = vpack.c.b16 %v589, %v588
    %v633 = vpack.c.b16 %v591, %v590
    %v634 = vpack.c.b16 %v593, %v592
    %v635 = vpack.c.b16 %v595, %v594
    %v636 = vpack.c.b16 %v597, %v596
    %v637 = vpack.c.b16 %v599, %v598
    %v638 = vpack.c.b16 %v601, %v600
    %v639 = vpack.c.b16 %v603, %v602
    %v640 = vpack.c.b16 %v605, %v604
    %v641 = vpack.c.b16 %v607, %v606
    %v642 = vpack.c.b16 %v609, %v608
    %v643 = vpack.c.b16 %v611, %v610
    %676 = vmatpush.bf16.msra.mxu0 %v619
    %677 = vmatpush.bf16.msra.mxu0 %v618
    %678 = vmatpush.bf16.msra.mxu0 %v617
    %679 = vmatpush.bf16.msra.mxu0 %v616
    %680 = vmatpush.bf16.msra.mxu0 %v615
    %681 = vmatpush.bf16.msra.mxu0 %v614
    %682 = vmatpush.bf16.msra.mxu0 %v613
    %683 = vmatpush.bf16.msra.mxu0 %v612
    %684 = vmatmul.bf16.gmra.mxu0 %v412
    %v685 = vpop.f32.mrf.mxu0
    %v686 = vadd.f32 %v482, %v685
    %v687 = vpop.f32.mrf.mxu0
    %688 = vdwg.mxu0
    %689 = vmatpush.bf16.msra.mxu0 %v627
    %690 = vmatpush.bf16.msra.mxu0 %v626
    %691 = vmatpush.bf16.msra.mxu0 %v625
    %692 = vmatpush.bf16.msra.mxu0 %v624
    %693 = vmatpush.bf16.msra.mxu0 %v623
    %694 = vmatpush.bf16.msra.mxu0 %v622
    %695 = vmatpush.bf16.msra.mxu0 %v621
    %696 = vmatpush.bf16.msra.mxu0 %v620
    %697 = vmatmul.bf16.gmra.mxu0 %v413
    %v698 = vpop.f32.mrf.mxu0
    %v699 = vadd.f32 %v686, %v698
    %v700 = vpop.f32.mrf.mxu0
    %701 = vdwg.mxu0
    %702 = vmatpush.bf16.msra.mxu0 %v635
    %703 = vmatpush.bf16.msra.mxu0 %v634
    %704 = vmatpush.bf16.msra.mxu0 %v633
    %705 = vmatpush.bf16.msra.mxu0 %v632
    %706 = vmatpush.bf16.msra.mxu0 %v631
    %707 = vmatpush.bf16.msra.mxu0 %v630
    %708 = vmatpush.bf16.msra.mxu0 %v629
    %709 = vmatpush.bf16.msra.mxu0 %v628
    %710 = vmatmul.bf16.gmra.mxu0 %v414
    %v711 = vpop.f32.mrf.mxu0
    %v712 = vadd.f32 %v699, %v711
    %v713 = vpop.f32.mrf.mxu0
    %714 = vdwg.mxu0
    %715 = vmatpush.bf16.msra.mxu0 %v643
    %716 = vmatpush.bf16.msra.mxu0 %v642
    %717 = vmatpush.bf16.msra.mxu0 %v641
    %718 = vmatpush.bf16.msra.mxu0 %v640
    %719 = vmatpush.bf16.msra.mxu0 %v639
    %720 = vmatpush.bf16.msra.mxu0 %v638
    %721 = vmatpush.bf16.msra.mxu0 %v637
    %722 = vmatpush.bf16.msra.mxu0 %v636
    %723 = vmatmul.bf16.gmra.mxu0 %v415
    %v724 = vpop.f32.mrf.mxu0
    %v725 = vadd.f32 %v712, %v724
    %v726 = vpop.f32.mrf.mxu0
    %727 = vdwg.mxu0
    %v728 = vld [vmem:[%s1] sm:$0xff]
    %v729 = vld [vmem:[%s1 + $0x8] sm:$0xff]
    %v730 = vld [vmem:[%s1 + $0x10] sm:$0xff]
    %v731 = vld [vmem:[%s1 + $0x18] sm:$0xff]
    %v732 = vld [vmem:[%s1 + $0x20] sm:$0xff]
    %v733 = vld [vmem:[%s1 + $0x28] sm:$0xff]
    %v734 = vld [vmem:[%s1 + $0x30] sm:$0xff]
    %v735 = vld [vmem:[%s1 + $0x38] sm:$0xff]
    %v736 = vld [vmem:[%s1 + $0x40] sm:$0xff]
    %v737 = vld [vmem:[%s1 + $0x48] sm:$0xff]
    %v738 = vld [vmem:[%s1 + $0x50] sm:$0xff]
    %v739 = vld [vmem:[%s1 + $0x58] sm:$0xff]
    %v740 = vld [vmem:[%s1 + $0x60] sm:$0xff]
    %v741 = vld [vmem:[%s1 + $0x68] sm:$0xff]
    %v742 = vld [vmem:[%s1 + $0x70] sm:$0xff]
    %v743 = vld [vmem:[%s1 + $0x78] sm:$0xff]
    %v744 = vpack.c.bf16 %v729, %v728
    %v745 = vpack.c.bf16 %v731, %v730
    %v746 = vpack.c.bf16 %v733, %v732
    %v747 = vpack.c.bf16 %v735, %v734
    %v748 = vpack.c.bf16 %v737, %v736
    %v749 = vpack.c.bf16 %v739, %v738
    %v750 = vpack.c.bf16 %v741, %v740
    %v751 = vpack.c.bf16 %v743, %v742
    %v752 = vld [vmem:[%s7] sm:$0xf]
    %v753 = vld [vmem:[%s8] sm:$0x1]
    %v755 = vperm.slane %v753, 0
    %vm757 = vcmask 64512
    %v759 = vsel %vm757, %v744, 0
    %v762 = vsel %vm757, %v745, 0
    %v765 = vsel %vm757, %v746, 0
    %v768 = vsel %vm757, %v747, 0
    %v771 = vsel %vm757, %v748, 0
    %v774 = vsel %vm757, %v749, 0
    %v777 = vsel %vm757, %v750, 0
    %v780 = vsel %vm757, %v751, 0
    %vm782 = vcmask 1043456
    %v784 = vsel %vm782, %v752, 0
    %786 = vmatpush.bf16.msra.mxu0 0
    %787 = vmatpush.bf16.msra.mxu0 0
    %788 = vmatpush.bf16.msra.mxu0 0
    %789 = vmatpush.bf16.msra.mxu0 0
    %790 = vmatpush.bf16.msra.mxu0 0
    %791 = vmatpush.bf16.msra.mxu0 0
    %792 = vmatpush.bf16.msra.mxu0 0
    %793 = vmatpush.bf16.msra.mxu0 %v784
    %794 = vmatmul.bf16.gmra.mxu0 %v759
    %v795 = vpop.f32.mrf.mxu0
    %v796 = vadd.f32 %v755, %v795
    %v797 = vpop.f32.mrf.mxu0
    %v798 = vadd.f32 %v755, %v797
    %799 = vmatmul.bf16.gmra.mxu0 %v762
    %v800 = vpop.f32.mrf.mxu0
    %v801 = vadd.f32 %v755, %v800
    %v802 = vpop.f32.mrf.mxu0
    %v803 = vadd.f32 %v755, %v802
    %804 = vmatmul.bf16.gmra.mxu0 %v765
    %v805 = vpop.f32.mrf.mxu0
    %v806 = vadd.f32 %v755, %v805
    %v807 = vpop.f32.mrf.mxu0
    %v808 = vadd.f32 %v755, %v807
    %809 = vmatmul.bf16.gmra.mxu0 %v768
    %v810 = vpop.f32.mrf.mxu0
    %v811 = vadd.f32 %v755, %v810
    %v812 = vpop.f32.mrf.mxu0
    %v813 = vadd.f32 %v755, %v812
    %814 = vmatmul.bf16.gmra.mxu0 %v771
    %v815 = vpop.f32.mrf.mxu0
    %v816 = vadd.f32 %v755, %v815
    %v817 = vpop.f32.mrf.mxu0
    %v818 = vadd.f32 %v755, %v817
    %819 = vmatmul.bf16.gmra.mxu0 %v774
    %v820 = vpop.f32.mrf.mxu0
    %v821 = vadd.f32 %v755, %v820
    %v822 = vpop.f32.mrf.mxu0
    %v823 = vadd.f32 %v755, %v822
    %824 = vmatmul.bf16.gmra.mxu0 %v777
    %v825 = vpop.f32.mrf.mxu0
    %v826 = vadd.f32 %v755, %v825
    %v827 = vpop.f32.mrf.mxu0
    %v828 = vadd.f32 %v755, %v827
    %829 = vmatmul.bf16.gmra.mxu0 %v780
    %v830 = vpop.f32.mrf.mxu0
    %v831 = vadd.f32 %v755, %v830
    %v832 = vpop.f32.mrf.mxu0
    %v833 = vadd.f32 %v755, %v832
    %834 = vdwg.mxu0
    %v835 = vmax.f32 %v796, 0.0
    %v836 = vmax.f32 %v798, 0.0
    %v837 = vmax.f32 %v801, 0.0
    %v838 = vmax.f32 %v803, 0.0
    %v839 = vmax.f32 %v806, 0.0
    %v840 = vmax.f32 %v808, 0.0
    %v841 = vmax.f32 %v811, 0.0
    %v842 = vmax.f32 %v813, 0.0
    %v843 = vmax.f32 %v816, 0.0
    %v844 = vmax.f32 %v818, 0.0
    %v845 = vmax.f32 %v821, 0.0
    %v846 = vmax.f32 %v823, 0.0
    %v847 = vmax.f32 %v826, 0.0
    %v848 = vmax.f32 %v828, 0.0
    %v849 = vmax.f32 %v831, 0.0
    %v850 = vmax.f32 %v833, 0.0
    %v851 = vpack.c.bf16 %v836, %v835
    %v852 = vpack.c.bf16 %v838, %v837
    %v853 = vpack.c.bf16 %v840, %v839
    %v854 = vpack.c.bf16 %v842, %v841
    %v855 = vpack.c.bf16 %v844, %v843
    %v856 = vpack.c.bf16 %v846, %v845
    %v857 = vpack.c.bf16 %v848, %v847
    %v858 = vpack.c.bf16 %v850, %v849
    %v859 = vld [vmem:[%s9] sm:$0xf]
    %v860 = vld [vmem:[%s9 + $0x4] sm:$0xf]
    %v861 = vld [vmem:[%s9 + $0x8] sm:$0xf]
    %v862 = vld [vmem:[%s9 + $0xc] sm:$0xf]
    %v863 = vld [vmem:[%s9 + $0x10] sm:$0xf]
    %v864 = vld [vmem:[%s9 + $0x14] sm:$0xf]
    %v865 = vld [vmem:[%s9 + $0x18] sm:$0xf]
    %v866 = vld [vmem:[%s9 + $0x1c] sm:$0xf]
    %v867 = vld [vmem:[%s9 + $0x20] sm:$0xf]
    %v868 = vld [vmem:[%s9 + $0x24] sm:$0xf]
    %v869 = vld [vmem:[%s9 + $0x28] sm:$0xf]
    %v870 = vld [vmem:[%s9 + $0x2c] sm:$0xf]
    %v871 = vld [vmem:[%s9 + $0x30] sm:$0xf]
    %v872 = vld [vmem:[%s9 + $0x34] sm:$0xf]
    %v873 = vld [vmem:[%s9 + $0x38] sm:$0xf]
    %v874 = vld [vmem:[%s9 + $0x3c] sm:$0xf]
    %v875 = vld [vmem:[%s10] sm:$0x1]
    %v877 = vperm.slane %v875, 0
    %v895 = vunpack.c.l.b16 %v859
    %v896 = vunpack.c.l.b16 %v860
    %v897 = vunpack.c.l.b16 %v861
    %v898 = vunpack.c.l.b16 %v862
    %v899 = vunpack.c.l.b16 %v863
    %v900 = vunpack.c.l.b16 %v864
    %v901 = vunpack.c.l.b16 %v865
    %v902 = vunpack.c.l.b16 %v866
    %v903 = vunpack.c.l.b16 %v867
    %v904 = vunpack.c.l.b16 %v868
    %v905 = vunpack.c.l.b16 %v869
    %v906 = vunpack.c.l.b16 %v870
    %v907 = vunpack.c.l.b16 %v871
    %v908 = vunpack.c.l.b16 %v872
    %v909 = vunpack.c.l.b16 %v873
    %v910 = vunpack.c.l.b16 %v874
    %v911 = vpack.c.b16 %v896, %v895
    %v912 = vpack.c.b16 %v898, %v897
    %v913 = vpack.c.b16 %v900, %v899
    %v914 = vpack.c.b16 %v902, %v901
    %v915 = vpack.c.b16 %v904, %v903
    %v916 = vpack.c.b16 %v906, %v905
    %v917 = vpack.c.b16 %v908, %v907
    %v918 = vpack.c.b16 %v910, %v909
    %927 = vmatpush.bf16.msra.mxu0 %v918
    %928 = vmatpush.bf16.msra.mxu0 %v917
    %929 = vmatpush.bf16.msra.mxu0 %v916
    %930 = vmatpush.bf16.msra.mxu0 %v915
    %931 = vmatpush.bf16.msra.mxu0 %v914
    %932 = vmatpush.bf16.msra.mxu0 %v913
    %933 = vmatpush.bf16.msra.mxu0 %v912
    %934 = vmatpush.bf16.msra.mxu0 %v911
    %935 = vmatmul.bf16.gmra.mxu0 %v851
    %v936 = vpop.f32.mrf.mxu0
    %v937 = vadd.f32 %v877, %v936
    %v938 = vpop.f32.mrf.mxu0
    %v939 = vadd.f32 %v877, %v938
    %940 = vmatmul.bf16.gmra.mxu0 %v852
    %v941 = vpop.f32.mrf.mxu0
    %v942 = vadd.f32 %v877, %v941
    %v943 = vpop.f32.mrf.mxu0
    %v944 = vadd.f32 %v877, %v943
    %945 = vmatmul.bf16.gmra.mxu0 %v853
    %v946 = vpop.f32.mrf.mxu0
    %v947 = vadd.f32 %v877, %v946
    %v948 = vpop.f32.mrf.mxu0
    %v949 = vadd.f32 %v877, %v948
    %950 = vmatmul.bf16.gmra.mxu0 %v854
    %v951 = vpop.f32.mrf.mxu0
    %v952 = vadd.f32 %v877, %v951
    %v953 = vpop.f32.mrf.mxu0
    %v954 = vadd.f32 %v877, %v953
    %955 = vmatmul.bf16.gmra.mxu0 %v855
    %v956 = vpop.f32.mrf.mxu0
    %v957 = vadd.f32 %v877, %v956
    %v958 = vpop.f32.mrf.mxu0
    %v959 = vadd.f32 %v877, %v958
    %960 = vmatmul.bf16.gmra.mxu0 %v856
    %v961 = vpop.f32.mrf.mxu0
    %v962 = vadd.f32 %v877, %v961
    %v963 = vpop.f32.mrf.mxu0
    %v964 = vadd.f32 %v877, %v963
    %965 = vmatmul.bf16.gmra.mxu0 %v857
    %v966 = vpop.f32.mrf.mxu0
    %v967 = vadd.f32 %v877, %v966
    %v968 = vpop.f32.mrf.mxu0
    %v969 = vadd.f32 %v877, %v968
    %970 = vmatmul.bf16.gmra.mxu0 %v858
    %v971 = vpop.f32.mrf.mxu0
    %v972 = vadd.f32 %v877, %v971
    %v973 = vpop.f32.mrf.mxu0
    %v974 = vadd.f32 %v877, %v973
    %975 = vdwg.mxu0
    %v976 = vmax.f32 %v937, 0.0
    %v977 = vmax.f32 %v939, 0.0
    %v978 = vmax.f32 %v942, 0.0
    %v979 = vmax.f32 %v944, 0.0
    %v980 = vmax.f32 %v947, 0.0
    %v981 = vmax.f32 %v949, 0.0
    %v982 = vmax.f32 %v952, 0.0
    %v983 = vmax.f32 %v954, 0.0
    %v984 = vmax.f32 %v957, 0.0
    %v985 = vmax.f32 %v959, 0.0
    %v986 = vmax.f32 %v962, 0.0
    %v987 = vmax.f32 %v964, 0.0
    %v988 = vmax.f32 %v967, 0.0
    %v989 = vmax.f32 %v969, 0.0
    %v990 = vmax.f32 %v972, 0.0
    %v991 = vmax.f32 %v974, 0.0
    %v992 = vadd.f32 %v976, %v977
    %v993 = vrot.slane %v992, 4
    %v994 = vadd.f32 %v992, %v993
    %v995 = vrot.slane %v994, 2
    %v996 = vadd.f32 %v994, %v995
    %v997 = vrot.slane %v996, 1
    %v998 = vadd.f32 %v996, %v997
    %v999 = vadd.f32 %v978, %v979
    %v1000 = vrot.slane %v999, 4
    %v1001 = vadd.f32 %v999, %v1000
    %v1002 = vrot.slane %v1001, 2
    %v1003 = vadd.f32 %v1001, %v1002
    %v1004 = vrot.slane %v1003, 1
    %v1005 = vadd.f32 %v1003, %v1004
    %v1006 = vadd.f32 %v980, %v981
    %v1007 = vrot.slane %v1006, 4
    %v1008 = vadd.f32 %v1006, %v1007
    %v1009 = vrot.slane %v1008, 2
    %v1010 = vadd.f32 %v1008, %v1009
    %v1011 = vrot.slane %v1010, 1
    %v1012 = vadd.f32 %v1010, %v1011
    %v1013 = vadd.f32 %v982, %v983
    %v1014 = vrot.slane %v1013, 4
    %v1015 = vadd.f32 %v1013, %v1014
    %v1016 = vrot.slane %v1015, 2
    %v1017 = vadd.f32 %v1015, %v1016
    %v1018 = vrot.slane %v1017, 1
    %v1019 = vadd.f32 %v1017, %v1018
    %v1020 = vadd.f32 %v984, %v985
    %v1021 = vrot.slane %v1020, 4
    %v1022 = vadd.f32 %v1020, %v1021
    %v1023 = vrot.slane %v1022, 2
    %v1024 = vadd.f32 %v1022, %v1023
    %v1025 = vrot.slane %v1024, 1
    %v1026 = vadd.f32 %v1024, %v1025
    %v1027 = vadd.f32 %v986, %v987
    %v1028 = vrot.slane %v1027, 4
    %v1029 = vadd.f32 %v1027, %v1028
    %v1030 = vrot.slane %v1029, 2
    %v1031 = vadd.f32 %v1029, %v1030
    %v1032 = vrot.slane %v1031, 1
    %v1033 = vadd.f32 %v1031, %v1032
    %v1034 = vadd.f32 %v988, %v989
    %v1035 = vrot.slane %v1034, 4
    %v1036 = vadd.f32 %v1034, %v1035
    %v1037 = vrot.slane %v1036, 2
    %v1038 = vadd.f32 %v1036, %v1037
    %v1039 = vrot.slane %v1038, 1
    %v1040 = vadd.f32 %v1038, %v1039
    %v1041 = vadd.f32 %v990, %v991
    %v1042 = vrot.slane %v1041, 4
    %v1043 = vadd.f32 %v1041, %v1042
    %v1044 = vrot.slane %v1043, 2
    %v1045 = vadd.f32 %v1043, %v1044
    %v1046 = vrot.slane %v1045, 1
    %v1047 = vadd.f32 %v1045, %v1046
    %v1048 = vmul.f32 %v998, 0.0625
    %v1049 = vmul.f32 %v1005, 0.0625
    %v1050 = vmul.f32 %v1012, 0.0625
    %v1051 = vmul.f32 %v1019, 0.0625
    %v1052 = vmul.f32 %v1026, 0.0625
    %v1053 = vmul.f32 %v1033, 0.0625
    %v1054 = vmul.f32 %v1040, 0.0625
    %v1055 = vmul.f32 %v1047, 0.0625
    %v1056 = vpack.c.bf16 %v725, %v725
    %v1057 = vld [vmem:[#allocation7] sm:$0xff]
    %v1058 = vld [vmem:[#allocation7 + $0x8] sm:$0xff]
    %v1059 = vld [vmem:[#allocation7 + $0x10] sm:$0xff]
    %v1060 = vld [vmem:[#allocation7 + $0x18] sm:$0xff]
    %v1061 = vld [vmem:[#allocation7 + $0x20] sm:$0xff]
    %v1062 = vld [vmem:[#allocation7 + $0x28] sm:$0xff]
    %v1063 = vld [vmem:[#allocation7 + $0x30] sm:$0xff]
    %v1064 = vld [vmem:[#allocation7 + $0x38] sm:$0xff]
    %v1065 = vld [vmem:[#allocation7 + $0x40] sm:$0xff]
    %v1066 = vld [vmem:[#allocation7 + $0x48] sm:$0xff]
    %v1067 = vld [vmem:[#allocation7 + $0x50] sm:$0xff]
    %v1068 = vld [vmem:[#allocation7 + $0x58] sm:$0xff]
    %v1069 = vld [vmem:[#allocation7 + $0x60] sm:$0xff]
    %v1070 = vld [vmem:[#allocation7 + $0x68] sm:$0xff]
    %v1071 = vld [vmem:[#allocation7 + $0x70] sm:$0xff]
    %v1072 = vld [vmem:[#allocation7 + $0x78] sm:$0xff]
    %v1073 = vld [vmem:[#allocation7 + $0x80] sm:$0xff]
    %v1074 = vld [vmem:[#allocation7 + $0x88] sm:$0xff]
    %v1075 = vld [vmem:[#allocation7 + $0x90] sm:$0xff]
    %v1076 = vld [vmem:[#allocation7 + $0x98] sm:$0xff]
    %v1077 = vld [vmem:[#allocation7 + $0xa0] sm:$0xff]
    %v1078 = vld [vmem:[#allocation7 + $0xa8] sm:$0xff]
    %v1079 = vld [vmem:[#allocation7 + $0xb0] sm:$0xff]
    %v1080 = vld [vmem:[#allocation7 + $0xb8] sm:$0xff]
    %v1081 = vld [vmem:[#allocation7 + $0xc0] sm:$0xff]
    %v1082 = vld [vmem:[#allocation7 + $0xc8] sm:$0xff]
    %v1083 = vld [vmem:[#allocation7 + $0xd0] sm:$0xff]
    %v1084 = vld [vmem:[#allocation7 + $0xd8] sm:$0xff]
    %v1085 = vld [vmem:[#allocation7 + $0xe0] sm:$0xff]
    %v1086 = vld [vmem:[#allocation7 + $0xe8] sm:$0xff]
    %v1087 = vld [vmem:[#allocation7 + $0xf0] sm:$0xff]
    %v1088 = vld [vmem:[#allocation7 + $0xf8] sm:$0xff]
    %v1089 = vpack.c.bf16 %v1048, %v1048
    %v1090 = vpack.c.bf16 %v1049, %v1049
    %v1091 = vpack.c.bf16 %v1050, %v1050
    %v1092 = vpack.c.bf16 %v1051, %v1051
    %v1093 = vpack.c.bf16 %v1052, %v1052
    %v1094 = vpack.c.bf16 %v1053, %v1053
    %v1095 = vpack.c.bf16 %v1054, %v1054
    %v1096 = vpack.c.bf16 %v1055, %v1055
    %v1097 = vld [vmem:[#allocation8] sm:$0xff]
    %v1098 = vld [vmem:[#allocation8 + $0x8] sm:$0xff]
    %v1099 = vld [vmem:[#allocation8 + $0x10] sm:$0xff]
    %v1100 = vld [vmem:[#allocation8 + $0x18] sm:$0xff]
    %v1101 = vld [vmem:[#allocation8 + $0x20] sm:$0xff]
    %v1102 = vld [vmem:[#allocation8 + $0x28] sm:$0xff]
    %v1103 = vld [vmem:[#allocation8 + $0x30] sm:$0xff]
    %v1104 = vld [vmem:[#allocation8 + $0x38] sm:$0xff]
    %v1105 = vld [vmem:[#allocation8 + $0x40] sm:$0xff]
    %v1106 = vld [vmem:[#allocation8 + $0x48] sm:$0xff]
    %v1107 = vld [vmem:[#allocation8 + $0x50] sm:$0xff]
    %v1108 = vld [vmem:[#allocation8 + $0x58] sm:$0xff]
    %v1109 = vld [vmem:[#allocation8 + $0x60] sm:$0xff]
    %v1110 = vld [vmem:[#allocation8 + $0x68] sm:$0xff]
    %v1111 = vld [vmem:[#allocation8 + $0x70] sm:$0xff]
    %v1112 = vld [vmem:[#allocation8 + $0x78] sm:$0xff]
    %v1113 = vld [vmem:[#allocation8 + $0x80] sm:$0xff]
    %v1114 = vld [vmem:[#allocation8 + $0x88] sm:$0xff]
    %v1115 = vld [vmem:[#allocation8 + $0x90] sm:$0xff]
    %v1116 = vld [vmem:[#allocation8 + $0x98] sm:$0xff]
    %v1117 = vld [vmem:[#allocation8 + $0xa0] sm:$0xff]
    %v1118 = vld [vmem:[#allocation8 + $0xa8] sm:$0xff]
    %v1119 = vld [vmem:[#allocation8 + $0xb0] sm:$0xff]
    %v1120 = vld [vmem:[#allocation8 + $0xb8] sm:$0xff]
    %v1121 = vld [vmem:[#allocation8 + $0xc0] sm:$0xff]
    %v1122 = vld [vmem:[#allocation8 + $0xc8] sm:$0xff]
    %v1123 = vld [vmem:[#allocation8 + $0xd0] sm:$0xff]
    %v1124 = vld [vmem:[#allocation8 + $0xd8] sm:$0xff]
    %v1125 = vld [vmem:[#allocation8 + $0xe0] sm:$0xff]
    %v1126 = vld [vmem:[#allocation8 + $0xe8] sm:$0xff]
    %v1127 = vld [vmem:[#allocation8 + $0xf0] sm:$0xff]
    %v1128 = vld [vmem:[#allocation8 + $0xf8] sm:$0xff]
    %v1137 = vunpack.c.l.b16 %v1089
    %v1138 = vunpack.c.l.b16 %v1090
    %v1139 = vunpack.c.l.b16 %v1091
    %v1140 = vunpack.c.l.b16 %v1092
    %v1141 = vunpack.c.l.b16 %v1093
    %v1142 = vunpack.c.l.b16 %v1094
    %v1143 = vunpack.c.l.b16 %v1095
    %v1144 = vunpack.c.l.b16 %v1096
    %vm1145 = vcmask 1041409
    %v1146 = vsel %vm1145, %v1138, %v1137
    %vm1147 = vcmask 1042434
    %v1148 = vsel %vm1147, %v1139, %v1146
    %vm1149 = vcmask 1043459
    %v1150 = vsel %vm1149, %v1140, %v1148
    %vm1151 = vcmask 1044484
    %v1152 = vsel %vm1151, %v1141, %v1150
    %vm1153 = vcmask 1045509
    %v1154 = vsel %vm1153, %v1142, %v1152
    %vm1155 = vcmask 1046534
    %v1156 = vsel %vm1155, %v1143, %v1154
    %vm1157 = vcmask 1047559
    %v1158 = vsel %vm1157, %v1144, %v1156
    %v1159 = vpack.c.b16 %v1158, %v1158
    %v1193 = vunpack.c.l.b16 %v1097
    %v1194 = vunpack.c.h.b16 %v1097
    %v1195 = vunpack.c.l.b16 %v1098
    %v1196 = vunpack.c.h.b16 %v1098
    %v1197 = vunpack.c.l.b16 %v1099
    %v1198 = vunpack.c.h.b16 %v1099
    %v1199 = vunpack.c.l.b16 %v1100
    %v1200 = vunpack.c.h.b16 %v1100
    %v1201 = vunpack.c.l.b16 %v1101
    %v1202 = vunpack.c.h.b16 %v1101
    %v1203 = vunpack.c.l.b16 %v1102
    %v1204 = vunpack.c.h.b16 %v1102
    %v1205 = vunpack.c.l.b16 %v1103
    %v1206 = vunpack.c.h.b16 %v1103
    %v1207 = vunpack.c.l.b16 %v1104
    %v1208 = vunpack.c.h.b16 %v1104
    %v1209 = vunpack.c.l.b16 %v1105
    %v1210 = vunpack.c.h.b16 %v1105
    %v1211 = vunpack.c.l.b16 %v1106
    %v1212 = vunpack.c.h.b16 %v1106
    %v1213 = vunpack.c.l.b16 %v1107
    %v1214 = vunpack.c.h.b16 %v1107
    %v1215 = vunpack.c.l.b16 %v1108
    %v1216 = vunpack.c.h.b16 %v1108
    %v1217 = vunpack.c.l.b16 %v1109
    %v1218 = vunpack.c.h.b16 %v1109
    %v1219 = vunpack.c.l.b16 %v1110
    %v1220 = vunpack.c.h.b16 %v1110
    %v1221 = vunpack.c.l.b16 %v1111
    %v1222 = vunpack.c.h.b16 %v1111
    %v1223 = vunpack.c.l.b16 %v1112
    %v1224 = vunpack.c.h.b16 %v1112
    %v1225 = vunpack.c.l.b16 %v1113
    %v1226 = vunpack.c.h.b16 %v1113
    %v1227 = vunpack.c.l.b16 %v1114
    %v1228 = vunpack.c.h.b16 %v1114
    %v1229 = vunpack.c.l.b16 %v1115
    %v1230 = vunpack.c.h.b16 %v1115
    %v1231 = vunpack.c.l.b16 %v1116
    %v1232 = vunpack.c.h.b16 %v1116
    %v1233 = vunpack.c.l.b16 %v1117
    %v1234 = vunpack.c.h.b16 %v1117
    %v1235 = vunpack.c.l.b16 %v1118
    %v1236 = vunpack.c.h.b16 %v1118
    %v1237 = vunpack.c.l.b16 %v1119
    %v1238 = vunpack.c.h.b16 %v1119
    %v1239 = vunpack.c.l.b16 %v1120
    %v1240 = vunpack.c.h.b16 %v1120
    %v1241 = vunpack.c.l.b16 %v1121
    %v1242 = vunpack.c.h.b16 %v1121
    %v1243 = vunpack.c.l.b16 %v1122
    %v1244 = vunpack.c.h.b16 %v1122
    %v1245 = vunpack.c.l.b16 %v1123
    %v1246 = vunpack.c.h.b16 %v1123
    %v1247 = vunpack.c.l.b16 %v1124
    %v1248 = vunpack.c.h.b16 %v1124
    %v1249 = vunpack.c.l.b16 %v1125
    %v1250 = vunpack.c.h.b16 %v1125
    %v1251 = vunpack.c.l.b16 %v1126
    %v1252 = vunpack.c.h.b16 %v1126
    %v1253 = vunpack.c.l.b16 %v1127
    %v1254 = vunpack.c.h.b16 %v1127
    %v1255 = vunpack.c.l.b16 %v1128
    %v1256 = vunpack.c.h.b16 %v1128
    %v1257 = vpack.c.b16 %v1197, %v1193
    %v1258 = vpack.c.b16 %v1198, %v1194
    %v1259 = vpack.c.b16 %v1199, %v1195
    %v1260 = vpack.c.b16 %v1200, %v1196
    %v1261 = vpack.c.b16 %v1205, %v1201
    %v1262 = vpack.c.b16 %v1206, %v1202
    %v1263 = vpack.c.b16 %v1207, %v1203
    %v1264 = vpack.c.b16 %v1208, %v1204
    %v1265 = vpack.c.b16 %v1213, %v1209
    %v1266 = vpack.c.b16 %v1214, %v1210
    %v1267 = vpack.c.b16 %v1215, %v1211
    %v1268 = vpack.c.b16 %v1216, %v1212
    %v1269 = vpack.c.b16 %v1221, %v1217
    %v1270 = vpack.c.b16 %v1222, %v1218
    %v1271 = vpack.c.b16 %v1223, %v1219
    %v1272 = vpack.c.b16 %v1224, %v1220
    %v1273 = vpack.c.b16 %v1229, %v1225
    %v1274 = vpack.c.b16 %v1230, %v1226
    %v1275 = vpack.c.b16 %v1231, %v1227
    %v1276 = vpack.c.b16 %v1232, %v1228
    %v1277 = vpack.c.b16 %v1237, %v1233
    %v1278 = vpack.c.b16 %v1238, %v1234
    %v1279 = vpack.c.b16 %v1239, %v1235
    %v1280 = vpack.c.b16 %v1240, %v1236
    %v1281 = vpack.c.b16 %v1245, %v1241
    %v1282 = vpack.c.b16 %v1246, %v1242
    %v1283 = vpack.c.b16 %v1247, %v1243
    %v1284 = vpack.c.b16 %v1248, %v1244
    %v1285 = vpack.c.b16 %v1253, %v1249
    %v1286 = vpack.c.b16 %v1254, %v1250
    %v1287 = vpack.c.b16 %v1255, %v1251
    %v1288 = vpack.c.b16 %v1256, %v1252
    %1321 = vmatpush.bf16.msra.mxu0 %v1285
    %1322 = vmatpush.bf16.msra.mxu0 %v1281
    %1323 = vmatpush.bf16.msra.mxu0 %v1277
    %1324 = vmatpush.bf16.msra.mxu0 %v1273
    %1325 = vmatpush.bf16.msra.mxu0 %v1269
    %1326 = vmatpush.bf16.msra.mxu0 %v1265
    %1327 = vmatpush.bf16.msra.mxu0 %v1261
    %1328 = vmatpush.bf16.msra.mxu0 %v1257
    %1329 = vmatmul.bf16.gmra.mxu0 %v1159
    %v1330 = vpop.f32.mrf.mxu0
    %v1331 = vadd.f32 0.0, %v1330
    %v1332 = vpop.f32.mrf.mxu0
    %1333 = vdwg.mxu0
    %1334 = vmatpush.bf16.msra.mxu0 %v1286
    %1335 = vmatpush.bf16.msra.mxu0 %v1282
    %1336 = vmatpush.bf16.msra.mxu0 %v1278
    %1337 = vmatpush.bf16.msra.mxu0 %v1274
    %1338 = vmatpush.bf16.msra.mxu0 %v1270
    %1339 = vmatpush.bf16.msra.mxu0 %v1266
    %1340 = vmatpush.bf16.msra.mxu0 %v1262
    %1341 = vmatpush.bf16.msra.mxu0 %v1258
    %1342 = vmatmul.bf16.gmra.mxu0 %v1159
    %v1343 = vpop.f32.mrf.mxu0
    %v1344 = vadd.f32 0.0, %v1343
    %v1345 = vpop.f32.mrf.mxu0
    %1346 = vdwg.mxu0
    %1347 = vmatpush.bf16.msra.mxu0 %v1287
    %1348 = vmatpush.bf16.msra.mxu0 %v1283
    %1349 = vmatpush.bf16.msra.mxu0 %v1279
    %1350 = vmatpush.bf16.msra.mxu0 %v1275
    %1351 = vmatpush.bf16.msra.mxu0 %v1271
    %1352 = vmatpush.bf16.msra.mxu0 %v1267
    %1353 = vmatpush.bf16.msra.mxu0 %v1263
    %1354 = vmatpush.bf16.msra.mxu0 %v1259
    %1355 = vmatmul.bf16.gmra.mxu0 %v1159
    %v1356 = vpop.f32.mrf.mxu0
    %v1357 = vadd.f32 0.0, %v1356
    %v1358 = vpop.f32.mrf.mxu0
    %1359 = vdwg.mxu0
    %1360 = vmatpush.bf16.msra.mxu0 %v1288
    %1361 = vmatpush.bf16.msra.mxu0 %v1284
    %1362 = vmatpush.bf16.msra.mxu0 %v1280
    %1363 = vmatpush.bf16.msra.mxu0 %v1276
    %1364 = vmatpush.bf16.msra.mxu0 %v1272
    %1365 = vmatpush.bf16.msra.mxu0 %v1268
    %1366 = vmatpush.bf16.msra.mxu0 %v1264
    %1367 = vmatpush.bf16.msra.mxu0 %v1260
    %1368 = vmatmul.bf16.gmra.mxu0 %v1159
    %v1369 = vpop.f32.mrf.mxu0
    %v1370 = vadd.f32 0.0, %v1369
    %v1371 = vpop.f32.mrf.mxu0
    %1372 = vdwg.mxu0
    %v1405 = vunpack.c.l.b16 %v1057
    %v1406 = vunpack.c.h.b16 %v1057
    %v1407 = vunpack.c.l.b16 %v1058
    %v1408 = vunpack.c.h.b16 %v1058
    %v1409 = vunpack.c.l.b16 %v1059
    %v1410 = vunpack.c.h.b16 %v1059
    %v1411 = vunpack.c.l.b16 %v1060
    %v1412 = vunpack.c.h.b16 %v1060
    %v1413 = vunpack.c.l.b16 %v1061
    %v1414 = vunpack.c.h.b16 %v1061
    %v1415 = vunpack.c.l.b16 %v1062
    %v1416 = vunpack.c.h.b16 %v1062
    %v1417 = vunpack.c.l.b16 %v1063
    %v1418 = vunpack.c.h.b16 %v1063
    %v1419 = vunpack.c.l.b16 %v1064
    %v1420 = vunpack.c.h.b16 %v1064
    %v1421 = vunpack.c.l.b16 %v1065
    %v1422 = vunpack.c.h.b16 %v1065
    %v1423 = vunpack.c.l.b16 %v1066
    %v1424 = vunpack.c.h.b16 %v1066
    %v1425 = vunpack.c.l.b16 %v1067
    %v1426 = vunpack.c.h.b16 %v1067
    %v1427 = vunpack.c.l.b16 %v1068
    %v1428 = vunpack.c.h.b16 %v1068
    %v1429 = vunpack.c.l.b16 %v1069
    %v1430 = vunpack.c.h.b16 %v1069
    %v1431 = vunpack.c.l.b16 %v1070
    %v1432 = vunpack.c.h.b16 %v1070
    %v1433 = vunpack.c.l.b16 %v1071
    %v1434 = vunpack.c.h.b16 %v1071
    %v1435 = vunpack.c.l.b16 %v1072
    %v1436 = vunpack.c.h.b16 %v1072
    %v1437 = vunpack.c.l.b16 %v1073
    %v1438 = vunpack.c.h.b16 %v1073
    %v1439 = vunpack.c.l.b16 %v1074
    %v1440 = vunpack.c.h.b16 %v1074
    %v1441 = vunpack.c.l.b16 %v1075
    %v1442 = vunpack.c.h.b16 %v1075
    %v1443 = vunpack.c.l.b16 %v1076
    %v1444 = vunpack.c.h.b16 %v1076
    %v1445 = vunpack.c.l.b16 %v1077
    %v1446 = vunpack.c.h.b16 %v1077
    %v1447 = vunpack.c.l.b16 %v1078
    %v1448 = vunpack.c.h.b16 %v1078
    %v1449 = vunpack.c.l.b16 %v1079
    %v1450 = vunpack.c.h.b16 %v1079
    %v1451 = vunpack.c.l.b16 %v1080
    %v1452 = vunpack.c.h.b16 %v1080
    %v1453 = vunpack.c.l.b16 %v1081
    %v1454 = vunpack.c.h.b16 %v1081
    %v1455 = vunpack.c.l.b16 %v1082
    %v1456 = vunpack.c.h.b16 %v1082
    %v1457 = vunpack.c.l.b16 %v1083
    %v1458 = vunpack.c.h.b16 %v1083
    %v1459 = vunpack.c.l.b16 %v1084
    %v1460 = vunpack.c.h.b16 %v1084
    %v1461 = vunpack.c.l.b16 %v1085
    %v1462 = vunpack.c.h.b16 %v1085
    %v1463 = vunpack.c.l.b16 %v1086
    %v1464 = vunpack.c.h.b16 %v1086
    %v1465 = vunpack.c.l.b16 %v1087
    %v1466 = vunpack.c.h.b16 %v1087
    %v1467 = vunpack.c.l.b16 %v1088
    %v1468 = vunpack.c.h.b16 %v1088
    %v1469 = vpack.c.b16 %v1409, %v1405
    %v1470 = vpack.c.b16 %v1410, %v1406
    %v1471 = vpack.c.b16 %v1411, %v1407
    %v1472 = vpack.c.b16 %v1412, %v1408
    %v1473 = vpack.c.b16 %v1417, %v1413
    %v1474 = vpack.c.b16 %v1418, %v1414
    %v1475 = vpack.c.b16 %v1419, %v1415
    %v1476 = vpack.c.b16 %v1420, %v1416
    %v1477 = vpack.c.b16 %v1425, %v1421
    %v1478 = vpack.c.b16 %v1426, %v1422
    %v1479 = vpack.c.b16 %v1427, %v1423
    %v1480 = vpack.c.b16 %v1428, %v1424
    %v1481 = vpack.c.b16 %v1433, %v1429
    %v1482 = vpack.c.b16 %v1434, %v1430
    %v1483 = vpack.c.b16 %v1435, %v1431
    %v1484 = vpack.c.b16 %v1436, %v1432
    %v1485 = vpack.c.b16 %v1441, %v1437
    %v1486 = vpack.c.b16 %v1442, %v1438
    %v1487 = vpack.c.b16 %v1443, %v1439
    %v1488 = vpack.c.b16 %v1444, %v1440
    %v1489 = vpack.c.b16 %v1449, %v1445
    %v1490 = vpack.c.b16 %v1450, %v1446
    %v1491 = vpack.c.b16 %v1451, %v1447
    %v1492 = vpack.c.b16 %v1452, %v1448
    %v1493 = vpack.c.b16 %v1457, %v1453
    %v1494 = vpack.c.b16 %v1458, %v1454
    %v1495 = vpack.c.b16 %v1459, %v1455
    %v1496 = vpack.c.b16 %v1460, %v1456
    %v1497 = vpack.c.b16 %v1465, %v1461
    %v1498 = vpack.c.b16 %v1466, %v1462
    %v1499 = vpack.c.b16 %v1467, %v1463
    %v1500 = vpack.c.b16 %v1468, %v1464
    %1533 = vmatpush.bf16.msra.mxu0 %v1497
    %1534 = vmatpush.bf16.msra.mxu0 %v1493
    %1535 = vmatpush.bf16.msra.mxu0 %v1489
    %1536 = vmatpush.bf16.msra.mxu0 %v1485
    %1537 = vmatpush.bf16.msra.mxu0 %v1481
    %1538 = vmatpush.bf16.msra.mxu0 %v1477
    %1539 = vmatpush.bf16.msra.mxu0 %v1473
    %1540 = vmatpush.bf16.msra.mxu0 %v1469
    %1541 = vmatmul.bf16.gmra.mxu0 %v1056
    %v1542 = vpop.f32.mrf.mxu0
    %v1543 = vadd.f32 %v1331, %v1542
    %v1544 = vpop.f32.mrf.mxu0
    %1545 = vdwg.mxu0
    %1546 = vmatpush.bf16.msra.mxu0 %v1498
    %1547 = vmatpush.bf16.msra.mxu0 %v1494
    %1548 = vmatpush.bf16.msra.mxu0 %v1490
    %1549 = vmatpush.bf16.msra.mxu0 %v1486
    %1550 = vmatpush.bf16.msra.mxu0 %v1482
    %1551 = vmatpush.bf16.msra.mxu0 %v1478
    %1552 = vmatpush.bf16.msra.mxu0 %v1474
    %1553 = vmatpush.bf16.msra.mxu0 %v1470
    %1554 = vmatmul.bf16.gmra.mxu0 %v1056
    %v1555 = vpop.f32.mrf.mxu0
    %v1556 = vadd.f32 %v1344, %v1555
    %v1557 = vpop.f32.mrf.mxu0
    %1558 = vdwg.mxu0
    %1559 = vmatpush.bf16.msra.mxu0 %v1499
    %1560 = vmatpush.bf16.msra.mxu0 %v1495
    %1561 = vmatpush.bf16.msra.mxu0 %v1491
    %1562 = vmatpush.bf16.msra.mxu0 %v1487
    %1563 = vmatpush.bf16.msra.mxu0 %v1483
    %1564 = vmatpush.bf16.msra.mxu0 %v1479
    %1565 = vmatpush.bf16.msra.mxu0 %v1475
    %1566 = vmatpush.bf16.msra.mxu0 %v1471
    %1567 = vmatmul.bf16.gmra.mxu0 %v1056
    %v1568 = vpop.f32.mrf.mxu0
    %v1569 = vadd.f32 %v1357, %v1568
    %v1570 = vpop.f32.mrf.mxu0
    %1571 = vdwg.mxu0
    %1572 = vmatpush.bf16.msra.mxu0 %v1500
    %1573 = vmatpush.bf16.msra.mxu0 %v1496
    %1574 = vmatpush.bf16.msra.mxu0 %v1492
    %1575 = vmatpush.bf16.msra.mxu0 %v1488
    %1576 = vmatpush.bf16.msra.mxu0 %v1484
    %1577 = vmatpush.bf16.msra.mxu0 %v1480
    %1578 = vmatpush.bf16.msra.mxu0 %v1476
    %1579 = vmatpush.bf16.msra.mxu0 %v1472
    %1580 = vmatmul.bf16.gmra.mxu0 %v1056
    %v1581 = vpop.f32.mrf.mxu0
    %v1582 = vadd.f32 %v1370, %v1581
    %v1583 = vpop.f32.mrf.mxu0
    %1584 = vdwg.mxu0
    %v1585 = vld [vmem:[%s2] sm:$0xff]
    %v1586 = vpack.c.bf16 %v1585, %v1585
    %v1587 = vld [vmem:[#allocation10] sm:$0xff]
    %v1588 = vld [vmem:[#allocation10 + $0x8] sm:$0xff]
    %v1589 = vld [vmem:[#allocation10 + $0x10] sm:$0xff]
    %v1590 = vld [vmem:[#allocation10 + $0x18] sm:$0xff]
    %v1591 = vld [vmem:[#allocation10 + $0x20] sm:$0xff]
    %v1592 = vld [vmem:[#allocation10 + $0x28] sm:$0xff]
    %v1593 = vld [vmem:[#allocation10 + $0x30] sm:$0xff]
    %v1594 = vld [vmem:[#allocation10 + $0x38] sm:$0xff]
    %v1595 = vld [vmem:[#allocation10 + $0x40] sm:$0xff]
    %v1596 = vld [vmem:[#allocation10 + $0x48] sm:$0xff]
    %v1597 = vld [vmem:[#allocation10 + $0x50] sm:$0xff]
    %v1598 = vld [vmem:[#allocation10 + $0x58] sm:$0xff]
    %v1599 = vld [vmem:[#allocation10 + $0x60] sm:$0xff]
    %v1600 = vld [vmem:[#allocation10 + $0x68] sm:$0xff]
    %v1601 = vld [vmem:[#allocation10 + $0x70] sm:$0xff]
    %v1602 = vld [vmem:[#allocation10 + $0x78] sm:$0xff]
    %v1603 = vld [vmem:[#allocation10 + $0x80] sm:$0xff]
    %v1604 = vld [vmem:[#allocation10 + $0x88] sm:$0xff]
    %v1605 = vld [vmem:[#allocation10 + $0x90] sm:$0xff]
    %v1606 = vld [vmem:[#allocation10 + $0x98] sm:$0xff]
    %v1607 = vld [vmem:[#allocation10 + $0xa0] sm:$0xff]
    %v1608 = vld [vmem:[#allocation10 + $0xa8] sm:$0xff]
    %v1609 = vld [vmem:[#allocation10 + $0xb0] sm:$0xff]
    %v1610 = vld [vmem:[#allocation10 + $0xb8] sm:$0xff]
    %v1611 = vld [vmem:[#allocation10 + $0xc0] sm:$0xff]
    %v1612 = vld [vmem:[#allocation10 + $0xc8] sm:$0xff]
    %v1613 = vld [vmem:[#allocation10 + $0xd0] sm:$0xff]
    %v1614 = vld [vmem:[#allocation10 + $0xd8] sm:$0xff]
    %v1615 = vld [vmem:[#allocation10 + $0xe0] sm:$0xff]
    %v1616 = vld [vmem:[#allocation10 + $0xe8] sm:$0xff]
    %v1617 = vld [vmem:[#allocation10 + $0xf0] sm:$0xff]
    %v1618 = vld [vmem:[#allocation10 + $0xf8] sm:$0xff]
    %v1651 = vunpack.c.l.b16 %v1587
    %v1652 = vunpack.c.h.b16 %v1587
    %v1653 = vunpack.c.l.b16 %v1588
    %v1654 = vunpack.c.h.b16 %v1588
    %v1655 = vunpack.c.l.b16 %v1589
    %v1656 = vunpack.c.h.b16 %v1589
    %v1657 = vunpack.c.l.b16 %v1590
    %v1658 = vunpack.c.h.b16 %v1590
    %v1659 = vunpack.c.l.b16 %v1591
    %v1660 = vunpack.c.h.b16 %v1591
    %v1661 = vunpack.c.l.b16 %v1592
    %v1662 = vunpack.c.h.b16 %v1592
    %v1663 = vunpack.c.l.b16 %v1593
    %v1664 = vunpack.c.h.b16 %v1593
    %v1665 = vunpack.c.l.b16 %v1594
    %v1666 = vunpack.c.h.b16 %v1594
    %v1667 = vunpack.c.l.b16 %v1595
    %v1668 = vunpack.c.h.b16 %v1595
    %v1669 = vunpack.c.l.b16 %v1596
    %v1670 = vunpack.c.h.b16 %v1596
    %v1671 = vunpack.c.l.b16 %v1597
    %v1672 = vunpack.c.h.b16 %v1597
    %v1673 = vunpack.c.l.b16 %v1598
    %v1674 = vunpack.c.h.b16 %v1598
    %v1675 = vunpack.c.l.b16 %v1599
    %v1676 = vunpack.c.h.b16 %v1599
    %v1677 = vunpack.c.l.b16 %v1600
    %v1678 = vunpack.c.h.b16 %v1600
    %v1679 = vunpack.c.l.b16 %v1601
    %v1680 = vunpack.c.h.b16 %v1601
    %v1681 = vunpack.c.l.b16 %v1602
    %v1682 = vunpack.c.h.b16 %v1602
    %v1683 = vunpack.c.l.b16 %v1603
    %v1684 = vunpack.c.h.b16 %v1603
    %v1685 = vunpack.c.l.b16 %v1604
    %v1686 = vunpack.c.h.b16 %v1604
    %v1687 = vunpack.c.l.b16 %v1605
    %v1688 = vunpack.c.h.b16 %v1605
    %v1689 = vunpack.c.l.b16 %v1606
    %v1690 = vunpack.c.h.b16 %v1606
    %v1691 = vunpack.c.l.b16 %v1607
    %v1692 = vunpack.c.h.b16 %v1607
    %v1693 = vunpack.c.l.b16 %v1608
    %v1694 = vunpack.c.h.b16 %v1608
    %v1695 = vunpack.c.l.b16 %v1609
    %v1696 = vunpack.c.h.b16 %v1609
    %v1697 = vunpack.c.l.b16 %v1610
    %v1698 = vunpack.c.h.b16 %v1610
    %v1699 = vunpack.c.l.b16 %v1611
    %v1700 = vunpack.c.h.b16 %v1611
    %v1701 = vunpack.c.l.b16 %v1612
    %v1702 = vunpack.c.h.b16 %v1612
    %v1703 = vunpack.c.l.b16 %v1613
    %v1704 = vunpack.c.h.b16 %v1613
    %v1705 = vunpack.c.l.b16 %v1614
    %v1706 = vunpack.c.h.b16 %v1614
    %v1707 = vunpack.c.l.b16 %v1615
    %v1708 = vunpack.c.h.b16 %v1615
    %v1709 = vunpack.c.l.b16 %v1616
    %v1710 = vunpack.c.h.b16 %v1616
    %v1711 = vunpack.c.l.b16 %v1617
    %v1712 = vunpack.c.h.b16 %v1617
    %v1713 = vunpack.c.l.b16 %v1618
    %v1714 = vunpack.c.h.b16 %v1618
    %v1715 = vpack.c.b16 %v1655, %v1651
    %v1716 = vpack.c.b16 %v1656, %v1652
    %v1717 = vpack.c.b16 %v1657, %v1653
    %v1718 = vpack.c.b16 %v1658, %v1654
    %v1719 = vpack.c.b16 %v1663, %v1659
    %v1720 = vpack.c.b16 %v1664, %v1660
    %v1721 = vpack.c.b16 %v1665, %v1661
    %v1722 = vpack.c.b16 %v1666, %v1662
    %v1723 = vpack.c.b16 %v1671, %v1667
    %v1724 = vpack.c.b16 %v1672, %v1668
    %v1725 = vpack.c.b16 %v1673, %v1669
    %v1726 = vpack.c.b16 %v1674, %v1670
    %v1727 = vpack.c.b16 %v1679, %v1675
    %v1728 = vpack.c.b16 %v1680, %v1676
    %v1729 = vpack.c.b16 %v1681, %v1677
    %v1730 = vpack.c.b16 %v1682, %v1678
    %v1731 = vpack.c.b16 %v1687, %v1683
    %v1732 = vpack.c.b16 %v1688, %v1684
    %v1733 = vpack.c.b16 %v1689, %v1685
    %v1734 = vpack.c.b16 %v1690, %v1686
    %v1735 = vpack.c.b16 %v1695, %v1691
    %v1736 = vpack.c.b16 %v1696, %v1692
    %v1737 = vpack.c.b16 %v1697, %v1693
    %v1738 = vpack.c.b16 %v1698, %v1694
    %v1739 = vpack.c.b16 %v1703, %v1699
    %v1740 = vpack.c.b16 %v1704, %v1700
    %v1741 = vpack.c.b16 %v1705, %v1701
    %v1742 = vpack.c.b16 %v1706, %v1702
    %v1743 = vpack.c.b16 %v1711, %v1707
    %v1744 = vpack.c.b16 %v1712, %v1708
    %v1745 = vpack.c.b16 %v1713, %v1709
    %v1746 = vpack.c.b16 %v1714, %v1710
    %1779 = vmatpush.bf16.msra.mxu0 %v1743
    %1780 = vmatpush.bf16.msra.mxu0 %v1739
    %1781 = vmatpush.bf16.msra.mxu0 %v1735
    %1782 = vmatpush.bf16.msra.mxu0 %v1731
    %1783 = vmatpush.bf16.msra.mxu0 %v1727
    %1784 = vmatpush.bf16.msra.mxu0 %v1723
    %1785 = vmatpush.bf16.msra.mxu0 %v1719
    %1786 = vmatpush.bf16.msra.mxu0 %v1715
    %1787 = vmatmul.bf16.gmra.mxu0 %v1586
    %v1788 = vpop.f32.mrf.mxu0
    %v1789 = vadd.f32 0.0, %v1788
    %v1790 = vpop.f32.mrf.mxu0
    %1791 = vdwg.mxu0
    %1792 = vmatpush.bf16.msra.mxu0 %v1744
    %1793 = vmatpush.bf16.msra.mxu0 %v1740
    %1794 = vmatpush.bf16.msra.mxu0 %v1736
    %1795 = vmatpush.bf16.msra.mxu0 %v1732
    %1796 = vmatpush.bf16.msra.mxu0 %v1728
    %1797 = vmatpush.bf16.msra.mxu0 %v1724
    %1798 = vmatpush.bf16.msra.mxu0 %v1720
    %1799 = vmatpush.bf16.msra.mxu0 %v1716
    %1800 = vmatmul.bf16.gmra.mxu0 %v1586
    %v1801 = vpop.f32.mrf.mxu0
    %v1802 = vadd.f32 0.0, %v1801
    %v1803 = vpop.f32.mrf.mxu0
    %1804 = vdwg.mxu0
    %1805 = vmatpush.bf16.msra.mxu0 %v1745
    %1806 = vmatpush.bf16.msra.mxu0 %v1741
    %1807 = vmatpush.bf16.msra.mxu0 %v1737
    %1808 = vmatpush.bf16.msra.mxu0 %v1733
    %1809 = vmatpush.bf16.msra.mxu0 %v1729
    %1810 = vmatpush.bf16.msra.mxu0 %v1725
    %1811 = vmatpush.bf16.msra.mxu0 %v1721
    %1812 = vmatpush.bf16.msra.mxu0 %v1717
    %1813 = vmatmul.bf16.gmra.mxu0 %v1586
    %v1814 = vpop.f32.mrf.mxu0
    %v1815 = vadd.f32 0.0, %v1814
    %v1816 = vpop.f32.mrf.mxu0
    %1817 = vdwg.mxu0
    %1818 = vmatpush.bf16.msra.mxu0 %v1746
    %1819 = vmatpush.bf16.msra.mxu0 %v1742
    %1820 = vmatpush.bf16.msra.mxu0 %v1738
    %1821 = vmatpush.bf16.msra.mxu0 %v1734
    %1822 = vmatpush.bf16.msra.mxu0 %v1730
    %1823 = vmatpush.bf16.msra.mxu0 %v1726
    %1824 = vmatpush.bf16.msra.mxu0 %v1722
    %1825 = vmatpush.bf16.msra.mxu0 %v1718
    %1826 = vmatmul.bf16.gmra.mxu0 %v1586
    %v1827 = vpop.f32.mrf.mxu0
    %v1828 = vadd.f32 0.0, %v1827
    %v1829 = vpop.f32.mrf.mxu0
    %1830 = vdwg.mxu0
    %v1831 = vadd.f32 %v1543, %v1789
    %v1832 = vadd.f32 %v1556, %v1802
    %v1833 = vadd.f32 %v1569, %v1815
    %v1834 = vadd.f32 %v1582, %v1828
    %v1835 = vld [vmem:[%s14] sm:$0xf]
    %v1837 = vperm.slane %v1835, 0
    %v1838 = vperm.slane %v1835, 1
    %v1839 = vperm.slane %v1835, 2
    %v1840 = vperm.slane %v1835, 3
    %v1845 = vadd.f32 %v1831, %v1837
    %v1846 = vadd.f32 %v1832, %v1838
    %v1847 = vadd.f32 %v1833, %v1839
    %v1848 = vadd.f32 %v1834, %v1840
    %v1849 = vmax.f32 %v1845, 0.0
    %v1850 = vmax.f32 %v1846, 0.0
    %v1851 = vmax.f32 %v1847, 0.0
    %v1852 = vmax.f32 %v1848, 0.0
    %v1853 = vpack.c.bf16 %v1849, %v1849
    %v1854 = vpack.c.bf16 %v1850, %v1850
    %v1855 = vpack.c.bf16 %v1851, %v1851
    %v1856 = vpack.c.bf16 %v1852, %v1852
    %v1857 = vld [vmem:[#allocation11] sm:$0xff]
    %v1858 = vld [vmem:[#allocation11 + $0x8] sm:$0xff]
    %v1859 = vld [vmem:[#allocation11 + $0x10] sm:$0xff]
    %v1860 = vld [vmem:[#allocation11 + $0x18] sm:$0xff]
    %v1861 = vld [vmem:[#allocation11 + $0x20] sm:$0xff]
    %v1862 = vld [vmem:[#allocation11 + $0x28] sm:$0xff]
    %v1863 = vld [vmem:[#allocation11 + $0x30] sm:$0xff]
    %v1864 = vld [vmem:[#allocation11 + $0x38] sm:$0xff]
    %v1865 = vld [vmem:[#allocation11 + $0x40] sm:$0xff]
    %v1866 = vld [vmem:[#allocation11 + $0x48] sm:$0xff]
    %v1867 = vld [vmem:[#allocation11 + $0x50] sm:$0xff]
    %v1868 = vld [vmem:[#allocation11 + $0x58] sm:$0xff]
    %v1869 = vld [vmem:[#allocation11 + $0x60] sm:$0xff]
    %v1870 = vld [vmem:[#allocation11 + $0x68] sm:$0xff]
    %v1871 = vld [vmem:[#allocation11 + $0x70] sm:$0xff]
    %v1872 = vld [vmem:[#allocation11 + $0x78] sm:$0xff]
    %v1873 = vld [vmem:[#allocation11 + $0x80] sm:$0xff]
    %v1874 = vld [vmem:[#allocation11 + $0x88] sm:$0xff]
    %v1875 = vld [vmem:[#allocation11 + $0x90] sm:$0xff]
    %v1876 = vld [vmem:[#allocation11 + $0x98] sm:$0xff]
    %v1877 = vld [vmem:[#allocation11 + $0xa0] sm:$0xff]
    %v1878 = vld [vmem:[#allocation11 + $0xa8] sm:$0xff]
    %v1879 = vld [vmem:[#allocation11 + $0xb0] sm:$0xff]
    %v1880 = vld [vmem:[#allocation11 + $0xb8] sm:$0xff]
    %v1881 = vld [vmem:[#allocation11 + $0xc0] sm:$0xff]
    %v1882 = vld [vmem:[#allocation11 + $0xc8] sm:$0xff]
    %v1883 = vld [vmem:[#allocation11 + $0xd0] sm:$0xff]
    %v1884 = vld [vmem:[#allocation11 + $0xd8] sm:$0xff]
    %v1885 = vld [vmem:[#allocation11 + $0xe0] sm:$0xff]
    %v1886 = vld [vmem:[#allocation11 + $0xe8] sm:$0xff]
    %v1887 = vld [vmem:[#allocation11 + $0xf0] sm:$0xff]
    %v1888 = vld [vmem:[#allocation11 + $0xf8] sm:$0xff]
    %v1889 = vld [vmem:[#allocation11 + $0x100] sm:$0xff]
    %v1890 = vld [vmem:[#allocation11 + $0x108] sm:$0xff]
    %v1891 = vld [vmem:[#allocation11 + $0x110] sm:$0xff]
    %v1892 = vld [vmem:[#allocation11 + $0x118] sm:$0xff]
    %v1893 = vld [vmem:[#allocation11 + $0x120] sm:$0xff]
    %v1894 = vld [vmem:[#allocation11 + $0x128] sm:$0xff]
    %v1895 = vld [vmem:[#allocation11 + $0x130] sm:$0xff]
    %v1896 = vld [vmem:[#allocation11 + $0x138] sm:$0xff]
    %v1897 = vld [vmem:[#allocation11 + $0x140] sm:$0xff]
    %v1898 = vld [vmem:[#allocation11 + $0x148] sm:$0xff]
    %v1899 = vld [vmem:[#allocation11 + $0x150] sm:$0xff]
    %v1900 = vld [vmem:[#allocation11 + $0x158] sm:$0xff]
    %v1901 = vld [vmem:[#allocation11 + $0x160] sm:$0xff]
    %v1902 = vld [vmem:[#allocation11 + $0x168] sm:$0xff]
    %v1903 = vld [vmem:[#allocation11 + $0x170] sm:$0xff]
    %v1904 = vld [vmem:[#allocation11 + $0x178] sm:$0xff]
    %v1905 = vld [vmem:[#allocation11 + $0x180] sm:$0xff]
    %v1906 = vld [vmem:[#allocation11 + $0x188] sm:$0xff]
    %v1907 = vld [vmem:[#allocation11 + $0x190] sm:$0xff]
    %v1908 = vld [vmem:[#allocation11 + $0x198] sm:$0xff]
    %v1909 = vld [vmem:[#allocation11 + $0x1a0] sm:$0xff]
    %v1910 = vld [vmem:[#allocation11 + $0x1a8] sm:$0xff]
    %v1911 = vld [vmem:[#allocation11 + $0x1b0] sm:$0xff]
    %v1912 = vld [vmem:[#allocation11 + $0x1b8] sm:$0xff]
    %v1913 = vld [vmem:[#allocation11 + $0x1c0] sm:$0xff]
    %v1914 = vld [vmem:[#allocation11 + $0x1c8] sm:$0xff]
    %v1915 = vld [vmem:[#allocation11 + $0x1d0] sm:$0xff]
    %v1916 = vld [vmem:[#allocation11 + $0x1d8] sm:$0xff]
    %v1917 = vld [vmem:[#allocation11 + $0x1e0] sm:$0xff]
    %v1918 = vld [vmem:[#allocation11 + $0x1e8] sm:$0xff]
    %v1919 = vld [vmem:[#allocation11 + $0x1f0] sm:$0xff]
    %v1920 = vld [vmem:[#allocation11 + $0x1f8] sm:$0xff]
    %v1921 = vld [vmem:[%s16] sm:$0x3]
    %v1923 = vperm.slane %v1921, 0
    %v1924 = vperm.slane %v1921, 1
    %v1991 = vunpack.c.l.b16 %v1857
    %v1992 = vunpack.c.h.b16 %v1857
    %v1993 = vunpack.c.l.b16 %v1858
    %v1994 = vunpack.c.h.b16 %v1858
    %v1995 = vunpack.c.l.b16 %v1859
    %v1996 = vunpack.c.h.b16 %v1859
    %v1997 = vunpack.c.l.b16 %v1860
    %v1998 = vunpack.c.h.b16 %v1860
    %v1999 = vunpack.c.l.b16 %v1861
    %v2000 = vunpack.c.h.b16 %v1861
    %v2001 = vunpack.c.l.b16 %v1862
    %v2002 = vunpack.c.h.b16 %v1862
    %v2003 = vunpack.c.l.b16 %v1863
    %v2004 = vunpack.c.h.b16 %v1863
    %v2005 = vunpack.c.l.b16 %v1864
    %v2006 = vunpack.c.h.b16 %v1864
    %v2007 = vunpack.c.l.b16 %v1865
    %v2008 = vunpack.c.h.b16 %v1865
    %v2009 = vunpack.c.l.b16 %v1866
    %v2010 = vunpack.c.h.b16 %v1866
    %v2011 = vunpack.c.l.b16 %v1867
    %v2012 = vunpack.c.h.b16 %v1867
    %v2013 = vunpack.c.l.b16 %v1868
    %v2014 = vunpack.c.h.b16 %v1868
    %v2015 = vunpack.c.l.b16 %v1869
    %v2016 = vunpack.c.h.b16 %v1869
    %v2017 = vunpack.c.l.b16 %v1870
    %v2018 = vunpack.c.h.b16 %v1870
    %v2019 = vunpack.c.l.b16 %v1871
    %v2020 = vunpack.c.h.b16 %v1871
    %v2021 = vunpack.c.l.b16 %v1872
    %v2022 = vunpack.c.h.b16 %v1872
    %v2023 = vunpack.c.l.b16 %v1873
    %v2024 = vunpack.c.h.b16 %v1873
    %v2025 = vunpack.c.l.b16 %v1874
    %v2026 = vunpack.c.h.b16 %v1874
    %v2027 = vunpack.c.l.b16 %v1875
    %v2028 = vunpack.c.h.b16 %v1875
    %v2029 = vunpack.c.l.b16 %v1876
    %v2030 = vunpack.c.h.b16 %v1876
    %v2031 = vunpack.c.l.b16 %v1877
    %v2032 = vunpack.c.h.b16 %v1877
    %v2033 = vunpack.c.l.b16 %v1878
    %v2034 = vunpack.c.h.b16 %v1878
    %v2035 = vunpack.c.l.b16 %v1879
    %v2036 = vunpack.c.h.b16 %v1879
    %v2037 = vunpack.c.l.b16 %v1880
    %v2038 = vunpack.c.h.b16 %v1880
    %v2039 = vunpack.c.l.b16 %v1881
    %v2040 = vunpack.c.h.b16 %v1881
    %v2041 = vunpack.c.l.b16 %v1882
    %v2042 = vunpack.c.h.b16 %v1882
    %v2043 = vunpack.c.l.b16 %v1883
    %v2044 = vunpack.c.h.b16 %v1883
    %v2045 = vunpack.c.l.b16 %v1884
    %v2046 = vunpack.c.h.b16 %v1884
    %v2047 = vunpack.c.l.b16 %v1885
    %v2048 = vunpack.c.h.b16 %v1885
    %v2049 = vunpack.c.l.b16 %v1886
    %v2050 = vunpack.c.h.b16 %v1886
    %v2051 = vunpack.c.l.b16 %v1887
    %v2052 = vunpack.c.h.b16 %v1887
    %v2053 = vunpack.c.l.b16 %v1888
    %v2054 = vunpack.c.h.b16 %v1888
    %v2055 = vunpack.c.l.b16 %v1889
    %v2056 = vunpack.c.h.b16 %v1889
    %v2057 = vunpack.c.l.b16 %v1890
    %v2058 = vunpack.c.h.b16 %v1890
    %v2059 = vunpack.c.l.b16 %v1891
    %v2060 = vunpack.c.h.b16 %v1891
    %v2061 = vunpack.c.l.b16 %v1892
    %v2062 = vunpack.c.h.b16 %v1892
    %v2063 = vunpack.c.l.b16 %v1893
    %v2064 = vunpack.c.h.b16 %v1893
    %v2065 = vunpack.c.l.b16 %v1894
    %v2066 = vunpack.c.h.b16 %v1894
    %v2067 = vunpack.c.l.b16 %v1895
    %v2068 = vunpack.c.h.b16 %v1895
    %v2069 = vunpack.c.l.b16 %v1896
    %v2070 = vunpack.c.h.b16 %v1896
    %v2071 = vunpack.c.l.b16 %v1897
    %v2072 = vunpack.c.h.b16 %v1897
    %v2073 = vunpack.c.l.b16 %v1898
    %v2074 = vunpack.c.h.b16 %v1898
    %v2075 = vunpack.c.l.b16 %v1899
    %v2076 = vunpack.c.h.b16 %v1899
    %v2077 = vunpack.c.l.b16 %v1900
    %v2078 = vunpack.c.h.b16 %v1900
    %v2079 = vunpack.c.l.b16 %v1901
    %v2080 = vunpack.c.h.b16 %v1901
    %v2081 = vunpack.c.l.b16 %v1902
    %v2082 = vunpack.c.h.b16 %v1902
    %v2083 = vunpack.c.l.b16 %v1903
    %v2084 = vunpack.c.h.b16 %v1903
    %v2085 = vunpack.c.l.b16 %v1904
    %v2086 = vunpack.c.h.b16 %v1904
    %v2087 = vunpack.c.l.b16 %v1905
    %v2088 = vunpack.c.h.b16 %v1905
    %v2089 = vunpack.c.l.b16 %v1906
    %v2090 = vunpack.c.h.b16 %v1906
    %v2091 = vunpack.c.l.b16 %v1907
    %v2092 = vunpack.c.h.b16 %v1907
    %v2093 = vunpack.c.l.b16 %v1908
    %v2094 = vunpack.c.h.b16 %v1908
    %v2095 = vunpack.c.l.b16 %v1909
    %v2096 = vunpack.c.h.b16 %v1909
    %v2097 = vunpack.c.l.b16 %v1910
    %v2098 = vunpack.c.h.b16 %v1910
    %v2099 = vunpack.c.l.b16 %v1911
    %v2100 = vunpack.c.h.b16 %v1911
    %v2101 = vunpack.c.l.b16 %v1912
    %v2102 = vunpack.c.h.b16 %v1912
    %v2103 = vunpack.c.l.b16 %v1913
    %v2104 = vunpack.c.h.b16 %v1913
    %v2105 = vunpack.c.l.b16 %v1914
    %v2106 = vunpack.c.h.b16 %v1914
    %v2107 = vunpack.c.l.b16 %v1915
    %v2108 = vunpack.c.h.b16 %v1915
    %v2109 = vunpack.c.l.b16 %v1916
    %v2110 = vunpack.c.h.b16 %v1916
    %v2111 = vunpack.c.l.b16 %v1917
    %v2112 = vunpack.c.h.b16 %v1917
    %v2113 = vunpack.c.l.b16 %v1918
    %v2114 = vunpack.c.h.b16 %v1918
    %v2115 = vunpack.c.l.b16 %v1919
    %v2116 = vunpack.c.h.b16 %v1919
    %v2117 = vunpack.c.l.b16 %v1920
    %v2118 = vunpack.c.h.b16 %v1920
    %v2119 = vpack.c.b16 %v1993, %v1991
    %v2120 = vpack.c.b16 %v1994, %v1992
    %v2121 = vpack.c.b16 %v1997, %v1995
    %v2122 = vpack.c.b16 %v1998, %v1996
    %v2123 = vpack.c.b16 %v2001, %v1999
    %v2124 = vpack.c.b16 %v2002, %v2000
    %v2125 = vpack.c.b16 %v2005, %v2003
    %v2126 = vpack.c.b16 %v2006, %v2004
    %v2127 = vpack.c.b16 %v2009, %v2007
    %v2128 = vpack.c.b16 %v2010, %v2008
    %v2129 = vpack.c.b16 %v2013, %v2011
    %v2130 = vpack.c.b16 %v2014, %v2012
    %v2131 = vpack.c.b16 %v2017, %v2015
    %v2132 = vpack.c.b16 %v2018, %v2016
    %v2133 = vpack.c.b16 %v2021, %v2019
    %v2134 = vpack.c.b16 %v2022, %v2020
    %v2135 = vpack.c.b16 %v2025, %v2023
    %v2136 = vpack.c.b16 %v2026, %v2024
    %v2137 = vpack.c.b16 %v2029, %v2027
    %v2138 = vpack.c.b16 %v2030, %v2028
    %v2139 = vpack.c.b16 %v2033, %v2031
    %v2140 = vpack.c.b16 %v2034, %v2032
    %v2141 = vpack.c.b16 %v2037, %v2035
    %v2142 = vpack.c.b16 %v2038, %v2036
    %v2143 = vpack.c.b16 %v2041, %v2039
    %v2144 = vpack.c.b16 %v2042, %v2040
    %v2145 = vpack.c.b16 %v2045, %v2043
    %v2146 = vpack.c.b16 %v2046, %v2044
    %v2147 = vpack.c.b16 %v2049, %v2047
    %v2148 = vpack.c.b16 %v2050, %v2048
    %v2149 = vpack.c.b16 %v2053, %v2051
    %v2150 = vpack.c.b16 %v2054, %v2052
    %v2151 = vpack.c.b16 %v2057, %v2055
    %v2152 = vpack.c.b16 %v2058, %v2056
    %v2153 = vpack.c.b16 %v2061, %v2059
    %v2154 = vpack.c.b16 %v2062, %v2060
    %v2155 = vpack.c.b16 %v2065, %v2063
    %v2156 = vpack.c.b16 %v2066, %v2064
    %v2157 = vpack.c.b16 %v2069, %v2067
    %v2158 = vpack.c.b16 %v2070, %v2068
    %v2159 = vpack.c.b16 %v2073, %v2071
    %v2160 = vpack.c.b16 %v2074, %v2072
    %v2161 = vpack.c.b16 %v2077, %v2075
    %v2162 = vpack.c.b16 %v2078, %v2076
    %v2163 = vpack.c.b16 %v2081, %v2079
    %v2164 = vpack.c.b16 %v2082, %v2080
    %v2165 = vpack.c.b16 %v2085, %v2083
    %v2166 = vpack.c.b16 %v2086, %v2084
    %v2167 = vpack.c.b16 %v2089, %v2087
    %v2168 = vpack.c.b16 %v2090, %v2088
    %v2169 = vpack.c.b16 %v2093, %v2091
    %v2170 = vpack.c.b16 %v2094, %v2092
    %v2171 = vpack.c.b16 %v2097, %v2095
    %v2172 = vpack.c.b16 %v2098, %v2096
    %v2173 = vpack.c.b16 %v2101, %v2099
    %v2174 = vpack.c.b16 %v2102, %v2100
    %v2175 = vpack.c.b16 %v2105, %v2103
    %v2176 = vpack.c.b16 %v2106, %v2104
    %v2177 = vpack.c.b16 %v2109, %v2107
    %v2178 = vpack.c.b16 %v2110, %v2108
    %v2179 = vpack.c.b16 %v2113, %v2111
    %v2180 = vpack.c.b16 %v2114, %v2112
    %v2181 = vpack.c.b16 %v2117, %v2115
    %v2182 = vpack.c.b16 %v2118, %v2116
    %2247 = vmatpush.bf16.msra.mxu0 %v2133
    %2248 = vmatpush.bf16.msra.mxu0 %v2131
    %2249 = vmatpush.bf16.msra.mxu0 %v2129
    %2250 = vmatpush.bf16.msra.mxu0 %v2127
    %2251 = vmatpush.bf16.msra.mxu0 %v2125
    %2252 = vmatpush.bf16.msra.mxu0 %v2123
    %2253 = vmatpush.bf16.msra.mxu0 %v2121
    %2254 = vmatpush.bf16.msra.mxu0 %v2119
    %2255 = vmatmul.bf16.gmra.mxu0 %v1853
    %v2256 = vpop.f32.mrf.mxu0
    %v2257 = vadd.f32 %v1923, %v2256
    %v2258 = vpop.f32.mrf.mxu0
    %2259 = vdwg.mxu0
    %2260 = vmatpush.bf16.msra.mxu0 %v2149
    %2261 = vmatpush.bf16.msra.mxu0 %v2147
    %2262 = vmatpush.bf16.msra.mxu0 %v2145
    %2263 = vmatpush.bf16.msra.mxu0 %v2143
    %2264 = vmatpush.bf16.msra.mxu0 %v2141
    %2265 = vmatpush.bf16.msra.mxu0 %v2139
    %2266 = vmatpush.bf16.msra.mxu0 %v2137
    %2267 = vmatpush.bf16.msra.mxu0 %v2135
    %2268 = vmatmul.bf16.gmra.mxu0 %v1854
    %v2269 = vpop.f32.mrf.mxu0
    %v2270 = vadd.f32 %v2257, %v2269
    %v2271 = vpop.f32.mrf.mxu0
    %2272 = vdwg.mxu0
    %2273 = vmatpush.bf16.msra.mxu0 %v2165
    %2274 = vmatpush.bf16.msra.mxu0 %v2163
    %2275 = vmatpush.bf16.msra.mxu0 %v2161
    %2276 = vmatpush.bf16.msra.mxu0 %v2159
    %2277 = vmatpush.bf16.msra.mxu0 %v2157
    %2278 = vmatpush.bf16.msra.mxu0 %v2155
    %2279 = vmatpush.bf16.msra.mxu0 %v2153
    %2280 = vmatpush.bf16.msra.mxu0 %v2151
    %2281 = vmatmul.bf16.gmra.mxu0 %v1855
    %v2282 = vpop.f32.mrf.mxu0
    %v2283 = vadd.f32 %v2270, %v2282
    %v2284 = vpop.f32.mrf.mxu0
    %2285 = vdwg.mxu0
    %2286 = vmatpush.bf16.msra.mxu0 %v2181
    %2287 = vmatpush.bf16.msra.mxu0 %v2179
    %2288 = vmatpush.bf16.msra.mxu0 %v2177
    %2289 = vmatpush.bf16.msra.mxu0 %v2175
    %2290 = vmatpush.bf16.msra.mxu0 %v2173
    %2291 = vmatpush.bf16.msra.mxu0 %v2171
    %2292 = vmatpush.bf16.msra.mxu0 %v2169
    %2293 = vmatpush.bf16.msra.mxu0 %v2167
    %2294 = vmatmul.bf16.gmra.mxu0 %v1856
    %v2295 = vpop.f32.mrf.mxu0
    %v2296 = vadd.f32 %v2283, %v2295
    %v2297 = vpop.f32.mrf.mxu0
    %2298 = vdwg.mxu0
    %2299 = vmatpush.bf16.msra.mxu0 %v2134
    %2300 = vmatpush.bf16.msra.mxu0 %v2132
    %2301 = vmatpush.bf16.msra.mxu0 %v2130
    %2302 = vmatpush.bf16.msra.mxu0 %v2128
    %2303 = vmatpush.bf16.msra.mxu0 %v2126
    %2304 = vmatpush.bf16.msra.mxu0 %v2124
    %2305 = vmatpush.bf16.msra.mxu0 %v2122
    %2306 = vmatpush.bf16.msra.mxu0 %v2120
    %2307 = vmatmul.bf16.gmra.mxu0 %v1853
    %v2308 = vpop.f32.mrf.mxu0
    %v2309 = vadd.f32 %v1924, %v2308
    %v2310 = vpop.f32.mrf.mxu0
    %2311 = vdwg.mxu0
    %2312 = vmatpush.bf16.msra.mxu0 %v2150
    %2313 = vmatpush.bf16.msra.mxu0 %v2148
    %2314 = vmatpush.bf16.msra.mxu0 %v2146
    %2315 = vmatpush.bf16.msra.mxu0 %v2144
    %2316 = vmatpush.bf16.msra.mxu0 %v2142
    %2317 = vmatpush.bf16.msra.mxu0 %v2140
    %2318 = vmatpush.bf16.msra.mxu0 %v2138
    %2319 = vmatpush.bf16.msra.mxu0 %v2136
    %2320 = vmatmul.bf16.gmra.mxu0 %v1854
    %v2321 = vpop.f32.mrf.mxu0
    %v2322 = vadd.f32 %v2309, %v2321
    %v2323 = vpop.f32.mrf.mxu0
    %2324 = vdwg.mxu0
    %2325 = vmatpush.bf16.msra.mxu0 %v2166
    %2326 = vmatpush.bf16.msra.mxu0 %v2164
    %2327 = vmatpush.bf16.msra.mxu0 %v2162
    %2328 = vmatpush.bf16.msra.mxu0 %v2160
    %2329 = vmatpush.bf16.msra.mxu0 %v2158
    %2330 = vmatpush.bf16.msra.mxu0 %v2156
    %2331 = vmatpush.bf16.msra.mxu0 %v2154
    %2332 = vmatpush.bf16.msra.mxu0 %v2152
    %2333 = vmatmul.bf16.gmra.mxu0 %v1855
    %v2334 = vpop.f32.mrf.mxu0
    %v2335 = vadd.f32 %v2322, %v2334
    %v2336 = vpop.f32.mrf.mxu0
    %2337 = vdwg.mxu0
    %2338 = vmatpush.bf16.msra.mxu0 %v2182
    %2339 = vmatpush.bf16.msra.mxu0 %v2180
    %2340 = vmatpush.bf16.msra.mxu0 %v2178
    %2341 = vmatpush.bf16.msra.mxu0 %v2176
    %2342 = vmatpush.bf16.msra.mxu0 %v2174
    %2343 = vmatpush.bf16.msra.mxu0 %v2172
    %2344 = vmatpush.bf16.msra.mxu0 %v2170
    %2345 = vmatpush.bf16.msra.mxu0 %v2168
    %2346 = vmatmul.bf16.gmra.mxu0 %v1856
    %v2347 = vpop.f32.mrf.mxu0
    %v2348 = vadd.f32 %v2335, %v2347
    %v2349 = vpop.f32.mrf.mxu0
    %2350 = vdwg.mxu0
    %2351 = vst [vmem:[#allocation13] sm:$0xff] %v2296
    %2352 = vst [vmem:[#allocation13 + $0x8] sm:$0xff] %v2348
    // Predicated region
    $region94: #{tpu_custom_call.1} parent=1 // pred_check
      _
    $region95: #{tpu_custom_call.1} parent=1 // pred_check_branch
      %2354 = sbr.rel (0) target = $region97
    $region96: #{tpu_custom_call.1} parent=1 // pred_region
      %2356 = vsyncadd [#allocation4], 0
      %s2358 = sshll.u32 [#allocation13], 4
      %s2359 = int_to_ptr.vmem [resolvable:$true] %s2358
      %s2360 = sshll.u32 %s17, 4
      %s2361 = int_to_ptr.hbm [resolvable:$true] %s2360
      %2363 = dma.vmem_to_hbm [thread:$0]  %s2359, 256, %s2361, [#allocation4]
    $region97: #{tpu_custom_call.1} parent=1 // pred_fallthru
      _
    // Predicated region
    $region98: #{tpu_custom_call.1} parent=1 // pred_check
      _
    $region99: #{tpu_custom_call.1} parent=1 // pred_check_branch
      %2365 = sbr.rel (0) target = $region101
    $region100: #{tpu_custom_call.1} parent=1 // pred_region
      %2367 = dma.done [#allocation4], 256
    $region101: #{tpu_custom_call.1} parent=1 // pred_fallthru
      _
    %2368 = vsyncpa [#allocation3], 1
    %2369 = vsyncpa [#allocation6], 1
    %2370 = vsyncpa [#allocation9], 1
    %2371 = vsyncpa [#allocation12], 1
    %2372 = vsyncpa [#allocation4], 1

</llo_original>
